<compile_context>
chip_gen: v5e
topology: v5e:2x2
jax: 0.10.0
libtpu: 0.0.40
codegen_flags: <defaults>
</compile_context>

<pallas_src>
import numpy as np
import jax
import jax.numpy as jnp
from jax.experimental import pallas as pl
from jax.experimental.pallas import tpu as pltpu


# ---------------------------------------------------------------------------
# Fused CAM kernel (one grid step per batch element)
# ---------------------------------------------------------------------------
def _cam_kernel(xh_ref, xl_ref, ah_ref, awk_ref, rsel_ref,
                wd_ref, bd_ref, w1_ref, b1_ref, w2_ref, b2_ref,
                wf1_ref, bf1_ref, wf2_ref, bf2_ref,
                o_ref, pad_ref):
    f32, bf16 = jnp.float32, jnp.bfloat16

    x_high = xh_ref[0]                       # (Hh, Wh*C) f32, lane-packed
    x_low = xl_ref[0]                        # (Hl, Wl*C) f32, lane-packed

    def resize(x):
        # Separable bilinear (align_corners=True): rows via A_h, columns via
        # kron(A_w^T, I_C).  bf16 MXU operands, f32 accumulation.
        t = jnp.dot(ah_ref[...], x.astype(bf16), preferred_element_type=f32)
        return jnp.dot(t.astype(bf16), awk_ref[...], preferred_element_type=f32)

    def conv_bn_relu(x, w_ref, b_ref, stride2=False):
        # x: (Hi, Wi*C) f32.  w_ref: (3, Wi*C, Wo*C) bf16 banded weights (BN
        # scale, column taps/stride/zero-padding folded in).  b_ref: (1, Wo*C).
        Hi, WiC = x.shape
        WoC = w_ref.shape[2]
        # Zero-row-padded copy of x in the shared VMEM scratch.
        pad_ref[...] = jnp.zeros(pad_ref.shape, f32)
        pad_ref[1:Hi + 1, 0:WiC] = x
        if stride2:
            # Exact 0/1 row-selection matmuls pick rows 2*i + dy of the padded
            # input -> stride-2 conv computed directly at output resolution.
            Ho = rsel_ref.shape[1]
            xr_b = pad_ref[0:Hi + 2, 0:WiC].astype(bf16)
            taps = [jnp.dot(rsel_ref[dy], xr_b,
                            preferred_element_type=f32).astype(bf16)
                    for dy in range(3)]
        else:
            Ho = Hi
            taps = [pad_ref[dy:dy + Hi, 0:WiC].astype(bf16) for dy in range(3)]
        acc = jnp.zeros((Ho, WoC), f32)
        for dy in range(3):
            acc = acc + jnp.dot(taps[dy], w_ref[dy], preferred_element_type=f32)
        return jnp.maximum(acc + b_ref[...], 0.0)

    right_1 = resize(x_high)                                        # (Hl, Wl*C)
    left_2 = conv_bn_relu(x_low, wd_ref, bd_ref, stride2=True)      # (Hh, Wh*C)
    left = conv_bn_relu(x_low * right_1, w1_ref, b1_ref)            # (Hl, Wl*C)
    right = conv_bn_relu(left_2 * x_high, w2_ref, b2_ref)           # (Hh, Wh*C)
    right = resize(right)                                           # (Hl, Wl*C)
    t = conv_bn_relu(left * right, wf1_ref, bf1_ref)                # (Hl, Wl*C)
    out = conv_bn_relu(t, wf2_ref, bf2_ref)                         # (Hl, Wl*C)
    o_ref[0] = out.astype(o_ref.dtype)


# ---------------------------------------------------------------------------
# Host-side operand preparation
# ---------------------------------------------------------------------------
def _interp_matrix(n_out, n_in):
    """1-D bilinear interpolation matrix matching F.interpolate(align_corners=True)."""
    A = np.zeros((n_out, n_in), np.float32)
    if n_out == 1:
        A[0, 0] = 1.0
        return A
    for i in range(n_out):
        src = i * (n_in - 1) / (n_out - 1)
        i0 = min(int(np.floor(src)), n_in - 1)
        i1 = min(i0 + 1, n_in - 1)
        f = src - i0
        A[i, i0] += 1.0 - f
        A[i, i1] += f
    return A


def _banded_weight(w_folded, Wi, Wo, stride, C):
    """(3, Wi*C, Wo*C) banded matrices for a 3x3 conv in lane-packed layout.

    B[dy, m*C+ci, j*C+co] = w[dy, dx, ci, co] where m = j*stride + dx - 1 is a
    valid input column; out-of-range columns are simply omitted (= zero pad)."""
    w = np.asarray(w_folded, np.float32)
    B = np.zeros((3, Wi * C, Wo * C), np.float32)
    for dy in range(3):
        for jout in range(Wo):
            for dx in range(3):
                m = jout * stride + dx - 1
                if 0 <= m < Wi:
                    B[dy, m * C:(m + 1) * C, jout * C:(jout + 1) * C] = w[dy, dx]
    return jnp.asarray(B, jnp.bfloat16)


def _row_select(Ho, Hi_pad, stride=2):
    """(3, Ho, Hi_pad) exact 0/1 matrices selecting padded row stride*i + dy."""
    R = np.zeros((3, Ho, Hi_pad), np.float32)
    for dy in range(3):
        for i in range(Ho):
            R[dy, i, stride * i + dy] = 1.0
    return jnp.asarray(R, jnp.bfloat16)


def init_params(key, channel):
    """Mirror of weight_init: kaiming_normal_ convs, identity-ish BatchNorm."""
    names = ["down", "c1", "c2", "f1", "f2"]
    keys = jax.random.split(key, len(names))
    std = float(np.sqrt(2.0 / (channel * 9)))   # fan_in, relu
    p = {}
    for k, name in zip(keys, names):
        p[name] = {
            "w": jax.random.normal(k, (3, 3, channel, channel), jnp.float32) * std,
            "gamma": jnp.ones((channel,), jnp.float32),
            "beta": jnp.zeros((channel,), jnp.float32),
            "mean": jnp.zeros((channel,), jnp.float32),
            "var": jnp.ones((channel,), jnp.float32),
        }
    return p


def fold_params(params, eps=1e-5):
    """Fold inference-mode BatchNorm into (scaled conv weight, bias)."""
    folded = {}
    for name, q in params.items():
        scale = q["gamma"] / jnp.sqrt(q["var"] + eps)
        folded[name] = (q["w"] * scale[None, None, None, :],
                        q["beta"] - q["mean"] * scale)
    return folded


# ---------------------------------------------------------------------------
# CAM forward (NHWC in / NHWC out) via the fused Pallas kernel
# ---------------------------------------------------------------------------
def cam_forward(x_high, x_low, params, eps=1e-5):
    N, Hh, Wh, C = x_high.shape
    _, Hl, Wl, _ = x_low.shape
    assert x_low.shape[0] == N and x_low.shape[3] == C
    assert (Hl + 1) // 2 == Hh and (Wl + 1) // 2 == Wh

    folded = fold_params(params, eps)

    ah = jnp.asarray(_interp_matrix(Hl, Hh), jnp.bfloat16)                 # (Hl, Hh)
    aw = _interp_matrix(Wl, Wh)
    awk = jnp.asarray(np.kron(aw.T, np.eye(C, dtype=np.float32)),
                      jnp.bfloat16)                                        # (Wh*C, Wl*C)
    rsel = _row_select(Hh, Hl + 2, stride=2)                               # (3, Hh, Hl+2)

    def bw(name, Wi, Wo, stride):
        w, b = folded[name]
        return (_banded_weight(w, Wi, Wo, stride, C),
                jnp.tile(b, (Wo,)).reshape(1, Wo * C).astype(jnp.float32))

    wd, bd = bw("down", Wl, Wh, 2)
    w1, b1 = bw("c1", Wl, Wl, 1)
    w2, b2 = bw("c2", Wh, Wh, 1)
    wf1, bf1 = bw("f1", Wl, Wl, 1)
    wf2, bf2 = bw("f2", Wl, Wl, 1)

    # Lane-packed views: (N, H, W*C) so the last dim fills the 128-lane axis.
    xh_p = x_high.reshape(N, Hh, Wh * C)
    xl_p = x_low.reshape(N, Hl, Wl * C)

    operands = [xh_p, xl_p, ah, awk, rsel,
                wd, bd, w1, b1, w2, b2, wf1, bf1, wf2, bf2]

    def cspec(arr):
        nd = arr.ndim
        return pl.BlockSpec(arr.shape, lambda n: (0,) * nd)

    in_specs = [pl.BlockSpec((1, Hh, Wh * C), lambda n: (n, 0, 0)),
                pl.BlockSpec((1, Hl, Wl * C), lambda n: (n, 0, 0))]
    in_specs += [cspec(a) for a in operands[2:]]

    out = pl.pallas_call(
        _cam_kernel,
        out_shape=jax.ShapeDtypeStruct((N, Hl, Wl * C), jnp.float32),
        grid_spec=pltpu.PrefetchScalarGridSpec(
            num_scalar_prefetch=0,
            grid=(N,),
            in_specs=in_specs,
            out_specs=pl.BlockSpec((1, Hl, Wl * C), lambda n: (n, 0, 0)),
            scratch_shapes=[pltpu.VMEM((Hl + 2, Wl * C), jnp.float32)]),
        compiler_params=pltpu.CompilerParams(
            dimension_semantics=("parallel",)),
    )(*operands)
    return out.reshape(N, Hl, Wl, C)


# ---------------------------------------------------------------------------
# Pure-JAX reference (same bf16 operand quantization, independent conv/resize)
# ---------------------------------------------------------------------------
def cam_reference(x_high, x_low, params, eps=1e-5):
    f32, bf16 = jnp.float32, jnp.bfloat16
    N, Hh, Wh, C = x_high.shape
    _, Hl, Wl, _ = x_low.shape
    folded = fold_params(params, eps)
    ah_b = jnp.asarray(_interp_matrix(Hl, Hh), bf16)
    aw_b = jnp.asarray(_interp_matrix(Wl, Wh), bf16)

    def up(x):
        t = jnp.einsum("oH,nHwc->nowc", ah_b, x.astype(bf16),
                       preferred_element_type=f32)
        return jnp.einsum("oW,nhWc->nhoc", aw_b, t.astype(bf16),
                          preferred_element_type=f32)

    def conv(x, name, stride=1):
        w, b = folded[name]
        y = jax.lax.conv_general_dilated(
            x.astype(bf16), w.astype(bf16), (stride, stride), ((1, 1), (1, 1)),
            dimension_numbers=("NHWC", "HWIO", "NHWC"),
            preferred_element_type=f32)
        return jnp.maximum(y + b[None, None, None, :], 0.0)

    right_1 = up(x_high)
    left_2 = conv(x_low, "down", stride=2)
    left = conv(x_low * right_1, "c1")
    right = conv(left_2 * x_high, "c2")
    right = up(right)
    t = conv(left * right, "f1")
    return conv(t, "f2")


# ---------------------------------------------------------------------------
if __name__ == "__main__":
    key = jax.random.PRNGKey(0)
    k_high, k_low, k_par = jax.random.split(key, 3)

    N, C = 2, 8
    Hh = Wh = 8      # x_high spatial
    Hl = Wl = 16     # x_low spatial (down(x_low) -> 8x8 == x_high spatial)

    # Inputs in PyTorch NCHW convention, transposed to NHWC for the kernel.
    x_high_nchw = jax.random.normal(k_high, (N, C, Hh, Wh), jnp.float32)
    x_low_nchw = jax.random.normal(k_low, (N, C, Hl, Wl), jnp.float32)
    params = init_params(k_par, C)

    xh = jnp.transpose(x_high_nchw, (0, 2, 3, 1))
    xl = jnp.transpose(x_low_nchw, (0, 2, 3, 1))

    out = cam_forward(xh, xl, params)
    out = jax.block_until_ready(out)
    assert out.shape == (N, Hl, Wl, C), out.shape
    out_nchw = jnp.transpose(out, (0, 3, 1, 2))
    assert out_nchw.shape == (N, C, Hl, Wl)

    ref = jax.block_until_ready(cam_reference(xh, xl, params))
    max_err = float(jnp.max(jnp.abs(out - ref)))
    # bf16 MXU operands with f32 accumulation; allow for bf16 re-rounding noise.
    assert max_err < 2e-2, f"mismatch vs reference: {max_err}"

    print("KERNEL_OK")
</pallas_src>

<mosaic_0001>
module attributes {stable_mosaic.version = 11 : i64} {
  func.func @_cam_kernel(%arg0: i32, %arg1: memref<1x8x64xf32, #tpu.memory_space<vmem>>, %arg2: memref<1x16x128xf32, #tpu.memory_space<vmem>>, %arg3: memref<16x8xbf16, #tpu.memory_space<vmem>>, %arg4: memref<64x128xbf16, #tpu.memory_space<vmem>>, %arg5: memref<3x8x18xbf16, #tpu.memory_space<vmem>>, %arg6: memref<3x128x64xbf16, #tpu.memory_space<vmem>>, %arg7: memref<1x64xf32, #tpu.memory_space<vmem>>, %arg8: memref<3x128x128xbf16, #tpu.memory_space<vmem>>, %arg9: memref<1x128xf32, #tpu.memory_space<vmem>>, %arg10: memref<3x64x64xbf16, #tpu.memory_space<vmem>>, %arg11: memref<1x64xf32, #tpu.memory_space<vmem>>, %arg12: memref<3x128x128xbf16, #tpu.memory_space<vmem>>, %arg13: memref<1x128xf32, #tpu.memory_space<vmem>>, %arg14: memref<3x128x128xbf16, #tpu.memory_space<vmem>>, %arg15: memref<1x128xf32, #tpu.memory_space<vmem>>, %arg16: memref<1x16x128xf32, #tpu.memory_space<vmem>>, %arg17: memref<18x128xf32, #tpu.memory_space<vmem>>) attributes {dimension_semantics = [#tpu.dimension_semantics<parallel>], iteration_bounds = array<i64: 2>, scalar_prefetch = 0 : i64, scratch_operands = 1 : i64, tpu.core_type = #tpu.core_type<tc>, window_params = [{transform_indices = @transform_0, window_bounds = array<i64: 1, 8, 64>}, {transform_indices = @transform_1, window_bounds = array<i64: 1, 16, 128>}, {pipeline_mode = #tpu.pipeline_mode<synchronous>, transform_indices = @transform_2, window_bounds = array<i64: 16, 8>}, {pipeline_mode = #tpu.pipeline_mode<synchronous>, transform_indices = @transform_3, window_bounds = array<i64: 64, 128>}, {pipeline_mode = #tpu.pipeline_mode<synchronous>, transform_indices = @transform_4, window_bounds = array<i64: 3, 8, 18>}, {pipeline_mode = #tpu.pipeline_mode<synchronous>, transform_indices = @transform_5, window_bounds = array<i64: 3, 128, 64>}, {pipeline_mode = #tpu.pipeline_mode<synchronous>, transform_indices = @transform_6, window_bounds = array<i64: 1, 64>}, {pipeline_mode = #tpu.pipeline_mode<synchronous>, transform_indices = @transform_7, window_bounds = array<i64: 3, 128, 128>}, {pipeline_mode = #tpu.pipeline_mode<synchronous>, transform_indices = @transform_8, window_bounds = array<i64: 1, 128>}, {pipeline_mode = #tpu.pipeline_mode<synchronous>, transform_indices = @transform_9, window_bounds = array<i64: 3, 64, 64>}, {pipeline_mode = #tpu.pipeline_mode<synchronous>, transform_indices = @transform_10, window_bounds = array<i64: 1, 64>}, {pipeline_mode = #tpu.pipeline_mode<synchronous>, transform_indices = @transform_11, window_bounds = array<i64: 3, 128, 128>}, {pipeline_mode = #tpu.pipeline_mode<synchronous>, transform_indices = @transform_12, window_bounds = array<i64: 1, 128>}, {pipeline_mode = #tpu.pipeline_mode<synchronous>, transform_indices = @transform_13, window_bounds = array<i64: 3, 128, 128>}, {pipeline_mode = #tpu.pipeline_mode<synchronous>, transform_indices = @transform_14, window_bounds = array<i64: 1, 128>}, {transform_indices = @transform_15, window_bounds = array<i64: 1, 16, 128>}]} {
    %c0 = arith.constant 0 : index
    %c0_0 = arith.constant 0 : index
    %c0_1 = arith.constant 0 : index
    %0 = vector.load %arg1[%c0, %c0_0, %c0_1] : memref<1x8x64xf32, #tpu.memory_space<vmem>>, vector<1x8x64xf32>
    %1 = vector.shape_cast %0 : vector<1x8x64xf32> to vector<8x64xf32>
    %c0_2 = arith.constant 0 : index
    %c0_3 = arith.constant 0 : index
    %c0_4 = arith.constant 0 : index
    %2 = vector.load %arg2[%c0_2, %c0_3, %c0_4] : memref<1x16x128xf32, #tpu.memory_space<vmem>>, vector<1x16x128xf32>
    %3 = vector.shape_cast %2 : vector<1x16x128xf32> to vector<16x128xf32>
    %c0_5 = arith.constant 0 : index
    %c0_6 = arith.constant 0 : index
    %4 = vector.load %arg3[%c0_5, %c0_6] : memref<16x8xbf16, #tpu.memory_space<vmem>>, vector<16x8xbf16>
    %5 = arith.truncf %1 : vector<8x64xf32> to vector<8x64xbf16>
    %cst = arith.constant dense<0.000000e+00> : vector<16x64xf32>
    %6 = tpu.matmul %4, %5, %cst {dimension_numbers = #tpu.dot_dimension_numbers<[1], [0], [0], [1], [0, 0, 1, 1], [], []>} : vector<16x8xbf16>, vector<8x64xbf16>, vector<16x64xf32> -> vector<16x64xf32>
    %7 = arith.truncf %6 : vector<16x64xf32> to vector<16x64xbf16>
    %c0_7 = arith.constant 0 : index
    %c0_8 = arith.constant 0 : index
    %8 = vector.load %arg4[%c0_7, %c0_8] : memref<64x128xbf16, #tpu.memory_space<vmem>>, vector<64x128xbf16>
    %cst_9 = arith.constant dense<0.000000e+00> : vector<16x128xf32>
    %9 = tpu.matmul %7, %8, %cst_9 {dimension_numbers = #tpu.dot_dimension_numbers<[1], [0], [0], [1], [0, 0, 1, 1], [], []>} : vector<16x64xbf16>, vector<64x128xbf16>, vector<16x128xf32> -> vector<16x128xf32>
    %cst_10 = arith.constant 0.000000e+00 : f32
    %10 = vector.broadcast %cst_10 : f32 to vector<18x128xf32>
    %c0_11 = arith.constant 0 : index
    %c0_12 = arith.constant 0 : index
    %11 = vector.load %arg17[%c0_11, %c0_12] : memref<18x128xf32, #tpu.memory_space<vmem>>, vector<18x128xf32>
    tpu.vector_store %arg17[%c0_11, %c0_12], %10 {strides = array<i32>} : memref<18x128xf32, #tpu.memory_space<vmem>>, vector<18x128xf32>,
    %c1 = arith.constant 1 : index
    %c0_13 = arith.constant 0 : index
    %12 = vector.load %arg17[%c1, %c0_13] : memref<18x128xf32, #tpu.memory_space<vmem>>, vector<16x128xf32>
    tpu.vector_store %arg17[%c1, %c0_13], %3 {strides = array<i32>} : memref<18x128xf32, #tpu.memory_space<vmem>>, vector<16x128xf32>,
    %c0_14 = arith.constant 0 : index
    %c0_15 = arith.constant 0 : index
    %13 = vector.load %arg17[%c0_14, %c0_15] : memref<18x128xf32, #tpu.memory_space<vmem>>, vector<18x128xf32>
    %14 = arith.truncf %13 : vector<18x128xf32> to vector<18x128xbf16>
    %c0_16 = arith.constant 0 : index
    %c0_17 = arith.constant 0 : index
    %c0_18 = arith.constant 0 : index
    %15 = vector.load %arg5[%c0_16, %c0_17, %c0_18] : memref<3x8x18xbf16, #tpu.memory_space<vmem>>, vector<1x8x18xbf16>
    %16 = vector.shape_cast %15 : vector<1x8x18xbf16> to vector<8x18xbf16>
    %cst_19 = arith.constant dense<0.000000e+00> : vector<8x128xf32>
    %17 = tpu.matmul %16, %14, %cst_19 {dimension_numbers = #tpu.dot_dimension_numbers<[1], [0], [0], [1], [0, 0, 1, 1], [], []>} : vector<8x18xbf16>, vector<18x128xbf16>, vector<8x128xf32> -> vector<8x128xf32>
    %18 = arith.truncf %17 : vector<8x128xf32> to vector<8x128xbf16>
    %c1_20 = arith.constant 1 : index
    %c0_21 = arith.constant 0 : index
    %c0_22 = arith.constant 0 : index
    %19 = vector.load %arg5[%c1_20, %c0_21, %c0_22] : memref<3x8x18xbf16, #tpu.memory_space<vmem>>, vector<1x8x18xbf16>
    %20 = vector.shape_cast %19 : vector<1x8x18xbf16> to vector<8x18xbf16>
    %cst_23 = arith.constant dense<0.000000e+00> : vector<8x128xf32>
    %21 = tpu.matmul %20, %14, %cst_23 {dimension_numbers = #tpu.dot_dimension_numbers<[1], [0], [0], [1], [0, 0, 1, 1], [], []>} : vector<8x18xbf16>, vector<18x128xbf16>, vector<8x128xf32> -> vector<8x128xf32>
    %22 = arith.truncf %21 : vector<8x128xf32> to vector<8x128xbf16>
    %c2 = arith.constant 2 : index
    %c0_24 = arith.constant 0 : index
    %c0_25 = arith.constant 0 : index
    %23 = vector.load %arg5[%c2, %c0_24, %c0_25] : memref<3x8x18xbf16, #tpu.memory_space<vmem>>, vector<1x8x18xbf16>
    %24 = vector.shape_cast %23 : vector<1x8x18xbf16> to vector<8x18xbf16>
    %cst_26 = arith.constant dense<0.000000e+00> : vector<8x128xf32>
    %25 = tpu.matmul %24, %14, %cst_26 {dimension_numbers = #tpu.dot_dimension_numbers<[1], [0], [0], [1], [0, 0, 1, 1], [], []>} : vector<8x18xbf16>, vector<18x128xbf16>, vector<8x128xf32> -> vector<8x128xf32>
    %26 = arith.truncf %25 : vector<8x128xf32> to vector<8x128xbf16>
    %cst_27 = arith.constant 0.000000e+00 : f32
    %27 = vector.broadcast %cst_27 : f32 to vector<8x64xf32>
    %c0_28 = arith.constant 0 : index
    %c0_29 = arith.constant 0 : index
    %c0_30 = arith.constant 0 : index
    %28 = vector.load %arg6[%c0_28, %c0_29, %c0_30] : memref<3x128x64xbf16, #tpu.memory_space<vmem>>, vector<1x128x64xbf16>
    %29 = vector.shape_cast %28 : vector<1x128x64xbf16> to vector<128x64xbf16>
    %cst_31 = arith.constant dense<0.000000e+00> : vector<8x64xf32>
    %30 = tpu.matmul %18, %29, %cst_31 {dimension_numbers = #tpu.dot_dimension_numbers<[1], [0], [0], [1], [0, 0, 1, 1], [], []>} : vector<8x128xbf16>, vector<128x64xbf16>, vector<8x64xf32> -> vector<8x64xf32>
    %31 = arith.addf %27, %30 : vector<8x64xf32>
    %c1_32 = arith.constant 1 : index
    %c0_33 = arith.constant 0 : index
    %c0_34 = arith.constant 0 : index
    %32 = vector.load %arg6[%c1_32, %c0_33, %c0_34] : memref<3x128x64xbf16, #tpu.memory_space<vmem>>, vector<1x128x64xbf16>
    %33 = vector.shape_cast %32 : vector<1x128x64xbf16> to vector<128x64xbf16>
    %cst_35 = arith.constant dense<0.000000e+00> : vector<8x64xf32>
    %34 = tpu.matmul %22, %33, %cst_35 {dimension_numbers = #tpu.dot_dimension_numbers<[1], [0], [0], [1], [0, 0, 1, 1], [], []>} : vector<8x128xbf16>, vector<128x64xbf16>, vector<8x64xf32> -> vector<8x64xf32>
    %35 = arith.addf %31, %34 : vector<8x64xf32>
    %c2_36 = arith.constant 2 : index
    %c0_37 = arith.constant 0 : index
    %c0_38 = arith.constant 0 : index
    %36 = vector.load %arg6[%c2_36, %c0_37, %c0_38] : memref<3x128x64xbf16, #tpu.memory_space<vmem>>, vector<1x128x64xbf16>
    %37 = vector.shape_cast %36 : vector<1x128x64xbf16> to vector<128x64xbf16>
    %cst_39 = arith.constant dense<0.000000e+00> : vector<8x64xf32>
    %38 = tpu.matmul %26, %37, %cst_39 {dimension_numbers = #tpu.dot_dimension_numbers<[1], [0], [0], [1], [0, 0, 1, 1], [], []>} : vector<8x128xbf16>, vector<128x64xbf16>, vector<8x64xf32> -> vector<8x64xf32>
    %39 = arith.addf %35, %38 : vector<8x64xf32>
    %c0_40 = arith.constant 0 : index
    %c0_41 = arith.constant 0 : index
    %40 = vector.load %arg7[%c0_40, %c0_41] : memref<1x64xf32, #tpu.memory_space<vmem>>, vector<1x64xf32>
    %41 = vector.broadcast %40 : vector<1x64xf32> to vector<8x64xf32>
    %42 = arith.addf %39, %41 : vector<8x64xf32>
    %cst_42 = arith.constant 0.000000e+00 : f32
    %43 = vector.broadcast %cst_42 : f32 to vector<8x64xf32>
    %44 = arith.maximumf %42, %43 : vector<8x64xf32>
    %45 = arith.mulf %3, %9 : vector<16x128xf32>
    %cst_43 = arith.constant 0.000000e+00 : f32
    %46 = vector.broadcast %cst_43 : f32 to vector<18x128xf32>
    %c0_44 = arith.constant 0 : index
    %c0_45 = arith.constant 0 : index
    %47 = vector.load %arg17[%c0_44, %c0_45] : memref<18x128xf32, #tpu.memory_space<vmem>>, vector<18x128xf32>
    tpu.vector_store %arg17[%c0_44, %c0_45], %46 {strides = array<i32>} : memref<18x128xf32, #tpu.memory_space<vmem>>, vector<18x128xf32>,
    %c1_46 = arith.constant 1 : index
    %c0_47 = arith.constant 0 : index
    %48 = vector.load %arg17[%c1_46, %c0_47] : memref<18x128xf32, #tpu.memory_space<vmem>>, vector<16x128xf32>
    tpu.vector_store %arg17[%c1_46, %c0_47], %45 {strides = array<i32>} : memref<18x128xf32, #tpu.memory_space<vmem>>, vector<16x128xf32>,
    %c0_48 = arith.constant 0 : index
    %c0_49 = arith.constant 0 : index
    %49 = vector.load %arg17[%c0_48, %c0_49] : memref<18x128xf32, #tpu.memory_space<vmem>>, vector<16x128xf32>
    %50 = arith.truncf %49 : vector<16x128xf32> to vector<16x128xbf16>
    %c1_50 = arith.constant 1 : index
    %c0_51 = arith.constant 0 : index
    %51 = vector.load %arg17[%c1_50, %c0_51] : memref<18x128xf32, #tpu.memory_space<vmem>>, vector<16x128xf32>
    %52 = arith.truncf %51 : vector<16x128xf32> to vector<16x128xbf16>
    %c2_52 = arith.constant 2 : index
    %c0_53 = arith.constant 0 : index
    %53 = vector.load %arg17[%c2_52, %c0_53] : memref<18x128xf32, #tpu.memory_space<vmem>>, vector<16x128xf32>
    %54 = arith.truncf %53 : vector<16x128xf32> to vector<16x128xbf16>
    %cst_54 = arith.constant 0.000000e+00 : f32
    %55 = vector.broadcast %cst_54 : f32 to vector<16x128xf32>
    %c0_55 = arith.constant 0 : index
    %c0_56 = arith.constant 0 : index
    %c0_57 = arith.constant 0 : index
    %56 = vector.load %arg8[%c0_55, %c0_56, %c0_57] : memref<3x128x128xbf16, #tpu.memory_space<vmem>>, vector<1x128x128xbf16>
    %57 = vector.shape_cast %56 : vector<1x128x128xbf16> to vector<128x128xbf16>
    %cst_58 = arith.constant dense<0.000000e+00> : vector<16x128xf32>
    %58 = tpu.matmul %50, %57, %cst_58 {dimension_numbers = #tpu.dot_dimension_numbers<[1], [0], [0], [1], [0, 0, 1, 1], [], []>} : vector<16x128xbf16>, vector<128x128xbf16>, vector<16x128xf32> -> vector<16x128xf32>
    %59 = arith.addf %55, %58 : vector<16x128xf32>
    %c1_59 = arith.constant 1 : index
    %c0_60 = arith.constant 0 : index
    %c0_61 = arith.constant 0 : index
    %60 = vector.load %arg8[%c1_59, %c0_60, %c0_61] : memref<3x128x128xbf16, #tpu.memory_space<vmem>>, vector<1x128x128xbf16>
    %61 = vector.shape_cast %60 : vector<1x128x128xbf16> to vector<128x128xbf16>
    %cst_62 = arith.constant dense<0.000000e+00> : vector<16x128xf32>
    %62 = tpu.matmul %52, %61, %cst_62 {dimension_numbers = #tpu.dot_dimension_numbers<[1], [0], [0], [1], [0, 0, 1, 1], [], []>} : vector<16x128xbf16>, vector<128x128xbf16>, vector<16x128xf32> -> vector<16x128xf32>
    %63 = arith.addf %59, %62 : vector<16x128xf32>
    %c2_63 = arith.constant 2 : index
    %c0_64 = arith.constant 0 : index
    %c0_65 = arith.constant 0 : index
    %64 = vector.load %arg8[%c2_63, %c0_64, %c0_65] : memref<3x128x128xbf16, #tpu.memory_space<vmem>>, vector<1x128x128xbf16>
    %65 = vector.shape_cast %64 : vector<1x128x128xbf16> to vector<128x128xbf16>
    %cst_66 = arith.constant dense<0.000000e+00> : vector<16x128xf32>
    %66 = tpu.matmul %54, %65, %cst_66 {dimension_numbers = #tpu.dot_dimension_numbers<[1], [0], [0], [1], [0, 0, 1, 1], [], []>} : vector<16x128xbf16>, vector<128x128xbf16>, vector<16x128xf32> -> vector<16x128xf32>
    %67 = arith.addf %63, %66 : vector<16x128xf32>
    %c0_67 = arith.constant 0 : index
    %c0_68 = arith.constant 0 : index
    %68 = vector.load %arg9[%c0_67, %c0_68] : memref<1x128xf32, #tpu.memory_space<vmem>>, vector<1x128xf32>
    %69 = vector.broadcast %68 : vector<1x128xf32> to vector<16x128xf32>
    %70 = arith.addf %67, %69 : vector<16x128xf32>
    %cst_69 = arith.constant 0.000000e+00 : f32
    %71 = vector.broadcast %cst_69 : f32 to vector<16x128xf32>
    %72 = arith.maximumf %70, %71 : vector<16x128xf32>
    %73 = arith.mulf %44, %1 : vector<8x64xf32>
    %cst_70 = arith.constant 0.000000e+00 : f32
    %74 = vector.broadcast %cst_70 : f32 to vector<18x128xf32>
    %c0_71 = arith.constant 0 : index
    %c0_72 = arith.constant 0 : index
    %75 = vector.load %arg17[%c0_71, %c0_72] : memref<18x128xf32, #tpu.memory_space<vmem>>, vector<18x128xf32>
    tpu.vector_store %arg17[%c0_71, %c0_72], %74 {strides = array<i32>} : memref<18x128xf32, #tpu.memory_space<vmem>>, vector<18x128xf32>,
    %c1_73 = arith.constant 1 : index
    %c0_74 = arith.constant 0 : index
    %76 = vector.load %arg17[%c1_73, %c0_74] : memref<18x128xf32, #tpu.memory_space<vmem>>, vector<8x64xf32>
    tpu.vector_store %arg17[%c1_73, %c0_74], %73 {strides = array<i32>} : memref<18x128xf32, #tpu.memory_space<vmem>>, vector<8x64xf32>,
    %c0_75 = arith.constant 0 : index
    %c0_76 = arith.constant 0 : index
    %77 = vector.load %arg17[%c0_75, %c0_76] : memref<18x128xf32, #tpu.memory_space<vmem>>, vector<8x64xf32>
    %78 = arith.truncf %77 : vector<8x64xf32> to vector<8x64xbf16>
    %c1_77 = arith.constant 1 : index
    %c0_78 = arith.constant 0 : index
    %79 = vector.load %arg17[%c1_77, %c0_78] : memref<18x128xf32, #tpu.memory_space<vmem>>, vector<8x64xf32>
    %80 = arith.truncf %79 : vector<8x64xf32> to vector<8x64xbf16>
    %c2_79 = arith.constant 2 : index
    %c0_80 = arith.constant 0 : index
    %81 = vector.load %arg17[%c2_79, %c0_80] : memref<18x128xf32, #tpu.memory_space<vmem>>, vector<8x64xf32>
    %82 = arith.truncf %81 : vector<8x64xf32> to vector<8x64xbf16>
    %cst_81 = arith.constant 0.000000e+00 : f32
    %83 = vector.broadcast %cst_81 : f32 to vector<8x64xf32>
    %c0_82 = arith.constant 0 : index
    %c0_83 = arith.constant 0 : index
    %c0_84 = arith.constant 0 : index
    %84 = vector.load %arg10[%c0_82, %c0_83, %c0_84] : memref<3x64x64xbf16, #tpu.memory_space<vmem>>, vector<1x64x64xbf16>
    %85 = vector.shape_cast %84 : vector<1x64x64xbf16> to vector<64x64xbf16>
    %cst_85 = arith.constant dense<0.000000e+00> : vector<8x64xf32>
    %86 = tpu.matmul %78, %85, %cst_85 {dimension_numbers = #tpu.dot_dimension_numbers<[1], [0], [0], [1], [0, 0, 1, 1], [], []>} : vector<8x64xbf16>, vector<64x64xbf16>, vector<8x64xf32> -> vector<8x64xf32>
    %87 = arith.addf %83, %86 : vector<8x64xf32>
    %c1_86 = arith.constant 1 : index
    %c0_87 = arith.constant 0 : index
    %c0_88 = arith.constant 0 : index
    %88 = vector.load %arg10[%c1_86, %c0_87, %c0_88] : memref<3x64x64xbf16, #tpu.memory_space<vmem>>, vector<1x64x64xbf16>
    %89 = vector.shape_cast %88 : vector<1x64x64xbf16> to vector<64x64xbf16>
    %cst_89 = arith.constant dense<0.000000e+00> : vector<8x64xf32>
    %90 = tpu.matmul %80, %89, %cst_89 {dimension_numbers = #tpu.dot_dimension_numbers<[1], [0], [0], [1], [0, 0, 1, 1], [], []>} : vector<8x64xbf16>, vector<64x64xbf16>, vector<8x64xf32> -> vector<8x64xf32>
    %91 = arith.addf %87, %90 : vector<8x64xf32>
    %c2_90 = arith.constant 2 : index
    %c0_91 = arith.constant 0 : index
    %c0_92 = arith.constant 0 : index
    %92 = vector.load %arg10[%c2_90, %c0_91, %c0_92] : memref<3x64x64xbf16, #tpu.memory_space<vmem>>, vector<1x64x64xbf16>
    %93 = vector.shape_cast %92 : vector<1x64x64xbf16> to vector<64x64xbf16>
    %cst_93 = arith.constant dense<0.000000e+00> : vector<8x64xf32>
    %94 = tpu.matmul %82, %93, %cst_93 {dimension_numbers = #tpu.dot_dimension_numbers<[1], [0], [0], [1], [0, 0, 1, 1], [], []>} : vector<8x64xbf16>, vector<64x64xbf16>, vector<8x64xf32> -> vector<8x64xf32>
    %95 = arith.addf %91, %94 : vector<8x64xf32>
    %c0_94 = arith.constant 0 : index
    %c0_95 = arith.constant 0 : index
    %96 = vector.load %arg11[%c0_94, %c0_95] : memref<1x64xf32, #tpu.memory_space<vmem>>, vector<1x64xf32>
    %97 = vector.broadcast %96 : vector<1x64xf32> to vector<8x64xf32>
    %98 = arith.addf %95, %97 : vector<8x64xf32>
    %cst_96 = arith.constant 0.000000e+00 : f32
    %99 = vector.broadcast %cst_96 : f32 to vector<8x64xf32>
    %100 = arith.maximumf %98, %99 : vector<8x64xf32>
    %c0_97 = arith.constant 0 : index
    %c0_98 = arith.constant 0 : index
    %101 = vector.load %arg3[%c0_97, %c0_98] : memref<16x8xbf16, #tpu.memory_space<vmem>>, vector<16x8xbf16>
    %102 = arith.truncf %100 : vector<8x64xf32> to vector<8x64xbf16>
    %cst_99 = arith.constant dense<0.000000e+00> : vector<16x64xf32>
    %103 = tpu.matmul %101, %102, %cst_99 {dimension_numbers = #tpu.dot_dimension_numbers<[1], [0], [0], [1], [0, 0, 1, 1], [], []>} : vector<16x8xbf16>, vector<8x64xbf16>, vector<16x64xf32> -> vector<16x64xf32>
    %104 = arith.truncf %103 : vector<16x64xf32> to vector<16x64xbf16>
    %c0_100 = arith.constant 0 : index
    %c0_101 = arith.constant 0 : index
    %105 = vector.load %arg4[%c0_100, %c0_101] : memref<64x128xbf16, #tpu.memory_space<vmem>>, vector<64x128xbf16>
    %cst_102 = arith.constant dense<0.000000e+00> : vector<16x128xf32>
    %106 = tpu.matmul %104, %105, %cst_102 {dimension_numbers = #tpu.dot_dimension_numbers<[1], [0], [0], [1], [0, 0, 1, 1], [], []>} : vector<16x64xbf16>, vector<64x128xbf16>, vector<16x128xf32> -> vector<16x128xf32>
    %107 = arith.mulf %72, %106 : vector<16x128xf32>
    %cst_103 = arith.constant 0.000000e+00 : f32
    %108 = vector.broadcast %cst_103 : f32 to vector<18x128xf32>
    %c0_104 = arith.constant 0 : index
    %c0_105 = arith.constant 0 : index
    %109 = vector.load %arg17[%c0_104, %c0_105] : memref<18x128xf32, #tpu.memory_space<vmem>>, vector<18x128xf32>
    tpu.vector_store %arg17[%c0_104, %c0_105], %108 {strides = array<i32>} : memref<18x128xf32, #tpu.memory_space<vmem>>, vector<18x128xf32>,
    %c1_106 = arith.constant 1 : index
    %c0_107 = arith.constant 0 : index
    %110 = vector.load %arg17[%c1_106, %c0_107] : memref<18x128xf32, #tpu.memory_space<vmem>>, vector<16x128xf32>
    tpu.vector_store %arg17[%c1_106, %c0_107], %107 {strides = array<i32>} : memref<18x128xf32, #tpu.memory_space<vmem>>, vector<16x128xf32>,
    %c0_108 = arith.constant 0 : index
    %c0_109 = arith.constant 0 : index
    %111 = vector.load %arg17[%c0_108, %c0_109] : memref<18x128xf32, #tpu.memory_space<vmem>>, vector<16x128xf32>
    %112 = arith.truncf %111 : vector<16x128xf32> to vector<16x128xbf16>
    %c1_110 = arith.constant 1 : index
    %c0_111 = arith.constant 0 : index
    %113 = vector.load %arg17[%c1_110, %c0_111] : memref<18x128xf32, #tpu.memory_space<vmem>>, vector<16x128xf32>
    %114 = arith.truncf %113 : vector<16x128xf32> to vector<16x128xbf16>
    %c2_112 = arith.constant 2 : index
    %c0_113 = arith.constant 0 : index
    %115 = vector.load %arg17[%c2_112, %c0_113] : memref<18x128xf32, #tpu.memory_space<vmem>>, vector<16x128xf32>
    %116 = arith.truncf %115 : vector<16x128xf32> to vector<16x128xbf16>
    %cst_114 = arith.constant 0.000000e+00 : f32
    %117 = vector.broadcast %cst_114 : f32 to vector<16x128xf32>
    %c0_115 = arith.constant 0 : index
    %c0_116 = arith.constant 0 : index
    %c0_117 = arith.constant 0 : index
    %118 = vector.load %arg12[%c0_115, %c0_116, %c0_117] : memref<3x128x128xbf16, #tpu.memory_space<vmem>>, vector<1x128x128xbf16>
    %119 = vector.shape_cast %118 : vector<1x128x128xbf16> to vector<128x128xbf16>
    %cst_118 = arith.constant dense<0.000000e+00> : vector<16x128xf32>
    %120 = tpu.matmul %112, %119, %cst_118 {dimension_numbers = #tpu.dot_dimension_numbers<[1], [0], [0], [1], [0, 0, 1, 1], [], []>} : vector<16x128xbf16>, vector<128x128xbf16>, vector<16x128xf32> -> vector<16x128xf32>
    %121 = arith.addf %117, %120 : vector<16x128xf32>
    %c1_119 = arith.constant 1 : index
    %c0_120 = arith.constant 0 : index
    %c0_121 = arith.constant 0 : index
    %122 = vector.load %arg12[%c1_119, %c0_120, %c0_121] : memref<3x128x128xbf16, #tpu.memory_space<vmem>>, vector<1x128x128xbf16>
    %123 = vector.shape_cast %122 : vector<1x128x128xbf16> to vector<128x128xbf16>
    %cst_122 = arith.constant dense<0.000000e+00> : vector<16x128xf32>
    %124 = tpu.matmul %114, %123, %cst_122 {dimension_numbers = #tpu.dot_dimension_numbers<[1], [0], [0], [1], [0, 0, 1, 1], [], []>} : vector<16x128xbf16>, vector<128x128xbf16>, vector<16x128xf32> -> vector<16x128xf32>
    %125 = arith.addf %121, %124 : vector<16x128xf32>
    %c2_123 = arith.constant 2 : index
    %c0_124 = arith.constant 0 : index
    %c0_125 = arith.constant 0 : index
    %126 = vector.load %arg12[%c2_123, %c0_124, %c0_125] : memref<3x128x128xbf16, #tpu.memory_space<vmem>>, vector<1x128x128xbf16>
    %127 = vector.shape_cast %126 : vector<1x128x128xbf16> to vector<128x128xbf16>
    %cst_126 = arith.constant dense<0.000000e+00> : vector<16x128xf32>
    %128 = tpu.matmul %116, %127, %cst_126 {dimension_numbers = #tpu.dot_dimension_numbers<[1], [0], [0], [1], [0, 0, 1, 1], [], []>} : vector<16x128xbf16>, vector<128x128xbf16>, vector<16x128xf32> -> vector<16x128xf32>
    %129 = arith.addf %125, %128 : vector<16x128xf32>
    %c0_127 = arith.constant 0 : index
    %c0_128 = arith.constant 0 : index
    %130 = vector.load %arg13[%c0_127, %c0_128] : memref<1x128xf32, #tpu.memory_space<vmem>>, vector<1x128xf32>
    %131 = vector.broadcast %130 : vector<1x128xf32> to vector<16x128xf32>
    %132 = arith.addf %129, %131 : vector<16x128xf32>
    %cst_129 = arith.constant 0.000000e+00 : f32
    %133 = vector.broadcast %cst_129 : f32 to vector<16x128xf32>
    %134 = arith.maximumf %132, %133 : vector<16x128xf32>
    %cst_130 = arith.constant 0.000000e+00 : f32
    %135 = vector.broadcast %cst_130 : f32 to vector<18x128xf32>
    %c0_131 = arith.constant 0 : index
    %c0_132 = arith.constant 0 : index
    %136 = vector.load %arg17[%c0_131, %c0_132] : memref<18x128xf32, #tpu.memory_space<vmem>>, vector<18x128xf32>
    tpu.vector_store %arg17[%c0_131, %c0_132], %135 {strides = array<i32>} : memref<18x128xf32, #tpu.memory_space<vmem>>, vector<18x128xf32>,
    %c1_133 = arith.constant 1 : index
    %c0_134 = arith.constant 0 : index
    %137 = vector.load %arg17[%c1_133, %c0_134] : memref<18x128xf32, #tpu.memory_space<vmem>>, vector<16x128xf32>
    tpu.vector_store %arg17[%c1_133, %c0_134], %134 {strides = array<i32>} : memref<18x128xf32, #tpu.memory_space<vmem>>, vector<16x128xf32>,
    %c0_135 = arith.constant 0 : index
    %c0_136 = arith.constant 0 : index
    %138 = vector.load %arg17[%c0_135, %c0_136] : memref<18x128xf32, #tpu.memory_space<vmem>>, vector<16x128xf32>
    %139 = arith.truncf %138 : vector<16x128xf32> to vector<16x128xbf16>
    %c1_137 = arith.constant 1 : index
    %c0_138 = arith.constant 0 : index
    %140 = vector.load %arg17[%c1_137, %c0_138] : memref<18x128xf32, #tpu.memory_space<vmem>>, vector<16x128xf32>
    %141 = arith.truncf %140 : vector<16x128xf32> to vector<16x128xbf16>
    %c2_139 = arith.constant 2 : index
    %c0_140 = arith.constant 0 : index
    %142 = vector.load %arg17[%c2_139, %c0_140] : memref<18x128xf32, #tpu.memory_space<vmem>>, vector<16x128xf32>
    %143 = arith.truncf %142 : vector<16x128xf32> to vector<16x128xbf16>
    %cst_141 = arith.constant 0.000000e+00 : f32
    %144 = vector.broadcast %cst_141 : f32 to vector<16x128xf32>
    %c0_142 = arith.constant 0 : index
    %c0_143 = arith.constant 0 : index
    %c0_144 = arith.constant 0 : index
    %145 = vector.load %arg14[%c0_142, %c0_143, %c0_144] : memref<3x128x128xbf16, #tpu.memory_space<vmem>>, vector<1x128x128xbf16>
    %146 = vector.shape_cast %145 : vector<1x128x128xbf16> to vector<128x128xbf16>
    %cst_145 = arith.constant dense<0.000000e+00> : vector<16x128xf32>
    %147 = tpu.matmul %139, %146, %cst_145 {dimension_numbers = #tpu.dot_dimension_numbers<[1], [0], [0], [1], [0, 0, 1, 1], [], []>} : vector<16x128xbf16>, vector<128x128xbf16>, vector<16x128xf32> -> vector<16x128xf32>
    %148 = arith.addf %144, %147 : vector<16x128xf32>
    %c1_146 = arith.constant 1 : index
    %c0_147 = arith.constant 0 : index
    %c0_148 = arith.constant 0 : index
    %149 = vector.load %arg14[%c1_146, %c0_147, %c0_148] : memref<3x128x128xbf16, #tpu.memory_space<vmem>>, vector<1x128x128xbf16>
    %150 = vector.shape_cast %149 : vector<1x128x128xbf16> to vector<128x128xbf16>
    %cst_149 = arith.constant dense<0.000000e+00> : vector<16x128xf32>
    %151 = tpu.matmul %141, %150, %cst_149 {dimension_numbers = #tpu.dot_dimension_numbers<[1], [0], [0], [1], [0, 0, 1, 1], [], []>} : vector<16x128xbf16>, vector<128x128xbf16>, vector<16x128xf32> -> vector<16x128xf32>
    %152 = arith.addf %148, %151 : vector<16x128xf32>
    %c2_150 = arith.constant 2 : index
    %c0_151 = arith.constant 0 : index
    %c0_152 = arith.constant 0 : index
    %153 = vector.load %arg14[%c2_150, %c0_151, %c0_152] : memref<3x128x128xbf16, #tpu.memory_space<vmem>>, vector<1x128x128xbf16>
    %154 = vector.shape_cast %153 : vector<1x128x128xbf16> to vector<128x128xbf16>
    %cst_153 = arith.constant dense<0.000000e+00> : vector<16x128xf32>
    %155 = tpu.matmul %143, %154, %cst_153 {dimension_numbers = #tpu.dot_dimension_numbers<[1], [0], [0], [1], [0, 0, 1, 1], [], []>} : vector<16x128xbf16>, vector<128x128xbf16>, vector<16x128xf32> -> vector<16x128xf32>
    %156 = arith.addf %152, %155 : vector<16x128xf32>
    %c0_154 = arith.constant 0 : index
    %c0_155 = arith.constant 0 : index
    %157 = vector.load %arg15[%c0_154, %c0_155] : memref<1x128xf32, #tpu.memory_space<vmem>>, vector<1x128xf32>
    %158 = vector.broadcast %157 : vector<1x128xf32> to vector<16x128xf32>
    %159 = arith.addf %156, %158 : vector<16x128xf32>
    %cst_156 = arith.constant 0.000000e+00 : f32
    %160 = vector.broadcast %cst_156 : f32 to vector<16x128xf32>
    %161 = arith.maximumf %159, %160 : vector<16x128xf32>
    %c0_157 = arith.constant 0 : index
    %c0_158 = arith.constant 0 : index
    %c0_159 = arith.constant 0 : index
    %162 = vector.load %arg16[%c0_157, %c0_158, %c0_159] : memref<1x16x128xf32, #tpu.memory_space<vmem>>, vector<1x16x128xf32>
    %163 = vector.shape_cast %162 : vector<1x16x128xf32> to vector<16x128xf32>
    %164 = vector.shape_cast %161 : vector<16x128xf32> to vector<1x16x128xf32>
    tpu.vector_store %arg16[%c0_157, %c0_158, %c0_159], %164 {strides = array<i32>} : memref<1x16x128xf32, #tpu.memory_space<vmem>>, vector<1x16x128xf32>,
    return
  }
  func.func @transform_0(%arg0: i32) -> (i32, i32, i32) {
    %c0_i32 = arith.constant 0 : i32
    %c0_i32_0 = arith.constant 0 : i32
    %c0_i32_1 = arith.constant 0 : i32
    return %arg0, %c0_i32, %c0_i32_0 : i32, i32, i32
  }
  func.func @transform_1(%arg0: i32) -> (i32, i32, i32) {
    %c0_i32 = arith.constant 0 : i32
    %c0_i32_0 = arith.constant 0 : i32
    %c0_i32_1 = arith.constant 0 : i32
    return %arg0, %c0_i32, %c0_i32_0 : i32, i32, i32
  }
  func.func @transform_2(%arg0: i32) -> (i32, i32) {
    %c0_i32 = arith.constant 0 : i32
    %c0_i32_0 = arith.constant 0 : i32
    %c0_i32_1 = arith.constant 0 : i32
    return %c0_i32, %c0_i32_0 : i32, i32
  }
  func.func @transform_3(%arg0: i32) -> (i32, i32) {
    %c0_i32 = arith.constant 0 : i32
    %c0_i32_0 = arith.constant 0 : i32
    %c0_i32_1 = arith.constant 0 : i32
    return %c0_i32, %c0_i32_0 : i32, i32
  }
  func.func @transform_4(%arg0: i32) -> (i32, i32, i32) {
    %c0_i32 = arith.constant 0 : i32
    %c0_i32_0 = arith.constant 0 : i32
    %c0_i32_1 = arith.constant 0 : i32
    %c0_i32_2 = arith.constant 0 : i32
    return %c0_i32, %c0_i32_0, %c0_i32_1 : i32, i32, i32
  }
  func.func @transform_5(%arg0: i32) -> (i32, i32, i32) {
    %c0_i32 = arith.constant 0 : i32
    %c0_i32_0 = arith.constant 0 : i32
    %c0_i32_1 = arith.constant 0 : i32
    %c0_i32_2 = arith.constant 0 : i32
    return %c0_i32, %c0_i32_0, %c0_i32_1 : i32, i32, i32
  }
  func.func @transform_6(%arg0: i32) -> (i32, i32) {
    %c0_i32 = arith.constant 0 : i32
    %c0_i32_0 = arith.constant 0 : i32
    %c0_i32_1 = arith.constant 0 : i32
    return %c0_i32, %c0_i32_0 : i32, i32
  }
  func.func @transform_7(%arg0: i32) -> (i32, i32, i32) {
    %c0_i32 = arith.constant 0 : i32
    %c0_i32_0 = arith.constant 0 : i32
    %c0_i32_1 = arith.constant 0 : i32
    %c0_i32_2 = arith.constant 0 : i32
    return %c0_i32, %c0_i32_0, %c0_i32_1 : i32, i32, i32
  }
  func.func @transform_8(%arg0: i32) -> (i32, i32) {
    %c0_i32 = arith.constant 0 : i32
    %c0_i32_0 = arith.constant 0 : i32
    %c0_i32_1 = arith.constant 0 : i32
    return %c0_i32, %c0_i32_0 : i32, i32
  }
  func.func @transform_9(%arg0: i32) -> (i32, i32, i32) {
    %c0_i32 = arith.constant 0 : i32
    %c0_i32_0 = arith.constant 0 : i32
    %c0_i32_1 = arith.constant 0 : i32
    %c0_i32_2 = arith.constant 0 : i32
    return %c0_i32, %c0_i32_0, %c0_i32_1 : i32, i32, i32
  }
  func.func @transform_10(%arg0: i32) -> (i32, i32) {
    %c0_i32 = arith.constant 0 : i32
    %c0_i32_0 = arith.constant 0 : i32
    %c0_i32_1 = arith.constant 0 : i32
    return %c0_i32, %c0_i32_0 : i32, i32
  }
  func.func @transform_11(%arg0: i32) -> (i32, i32, i32) {
    %c0_i32 = arith.constant 0 : i32
    %c0_i32_0 = arith.constant 0 : i32
    %c0_i32_1 = arith.constant 0 : i32
    %c0_i32_2 = arith.constant 0 : i32
    return %c0_i32, %c0_i32_0, %c0_i32_1 : i32, i32, i32
  }
  func.func @transform_12(%arg0: i32) -> (i32, i32) {
    %c0_i32 = arith.constant 0 : i32
    %c0_i32_0 = arith.constant 0 : i32
    %c0_i32_1 = arith.constant 0 : i32
    return %c0_i32, %c0_i32_0 : i32, i32
  }
  func.func @transform_13(%arg0: i32) -> (i32, i32, i32) {
    %c0_i32 = arith.constant 0 : i32
    %c0_i32_0 = arith.constant 0 : i32
    %c0_i32_1 = arith.constant 0 : i32
    %c0_i32_2 = arith.constant 0 : i32
    return %c0_i32, %c0_i32_0, %c0_i32_1 : i32, i32, i32
  }
  func.func @transform_14(%arg0: i32) -> (i32, i32) {
    %c0_i32 = arith.constant 0 : i32
    %c0_i32_0 = arith.constant 0 : i32
    %c0_i32_1 = arith.constant 0 : i32
    return %c0_i32, %c0_i32_0 : i32, i32
  }
  func.func @transform_15(%arg0: i32) -> (i32, i32, i32) {
    %c0_i32 = arith.constant 0 : i32
    %c0_i32_0 = arith.constant 0 : i32
    %c0_i32_1 = arith.constant 0 : i32
    return %arg0, %c0_i32, %c0_i32_0 : i32, i32, i32
  }
}

</mosaic_0001>

<llo_original>
// kernel: tpu_custom_call.1
$region0: #{tpu_custom_call.1}
  #allocation0 [shape = 'u32[]', space=smem, size = 0x4, offset = 0x4, fixed_abs, tag = 'smem constant byte address 0x4 - core index']
  #allocation1 [shape = 'u32[72,128]{1,0:T(1,128)}', space=vmem, size = 0x9000, scoped, tag = 'internal scratch']
  #allocation2 [shape = 'f32[18,128]{1,0:T(8,128)}', space=vmem, size = 0x3000, scoped, tag = 'scratch operand']
  %s0 = inlined_call_operand.vmem [shape: f32[2,8,64], index: 0, kind: input, shape index: {}]
  %s1 = inlined_call_operand.hbm [shape: f32[2,16,128], index: 1, kind: input, shape index: {}]
  %s2 = inlined_call_operand.vmem [shape: bf16[16,8], index: 2, kind: input, shape index: {}]
  %s3 = inlined_call_operand.hbm [shape: bf16[64,128], index: 3, kind: input, shape index: {}]
  %s4 = inlined_call_operand.hbm [shape: bf16[3,8,18], index: 4, kind: input, shape index: {}]
  %s5 = inlined_call_operand.vmem [shape: bf16[3,128,64], index: 5, kind: input, shape index: {}]
  %s6 = inlined_call_operand.vmem [shape: f32[1,64], index: 6, kind: input, shape index: {}]
  %s7 = inlined_call_operand.vmem [shape: bf16[3,128,128], index: 7, kind: input, shape index: {}]
  %s8 = inlined_call_operand.vmem [shape: f32[1,128], index: 8, kind: input, shape index: {}]
  %s9 = inlined_call_operand.vmem [shape: bf16[3,64,64], index: 9, kind: input, shape index: {}]
  %s10 = inlined_call_operand.vmem [shape: f32[1,64], index: 10, kind: input, shape index: {}]
  %s11 = inlined_call_operand.hbm [shape: bf16[3,128,128], index: 11, kind: input, shape index: {}]
  %s12 = inlined_call_operand.vmem [shape: f32[1,128], index: 12, kind: input, shape index: {}]
  %s13 = inlined_call_operand.hbm [shape: bf16[3,128,128], index: 13, kind: input, shape index: {}]
  %s14 = inlined_call_operand.vmem [shape: f32[1,128], index: 14, kind: input, shape index: {}]
  %s15 = inlined_call_operand.hbm [shape: f32[2,16,128], index: 15, kind: output, shape index: {}]
  %s16 = sld [smem:[#allocation0]]
  $region113: #{tpu_custom_call.1} parent=0
    _
  %s18 = ssub.s32 1, %s16
  %s19 = scalar_select 0, %s18, %s16
  $region1: #{tpu_custom_call.1} parent=0
    #allocation3 [shape = 'u8[16384]{0}', space=vmem, size = 0x4000, scoped, tag = 'input window, operand 1']
    #allocation4 [shape = 's32[2]{0}', space=sflag, size = 0x8, scoped, tag = 'scoped memory for tpu_custom_call.1']
    #allocation5 [shape = 's32[2]{0}', space=sflag, size = 0x8, scoped, tag = 'scoped memory for tpu_custom_call.1']
    #allocation6 [shape = 'u8[16384]{0}', space=vmem, size = 0x4000, scoped, tag = 'input window, operand 3, single buffered']
    #allocation7 [shape = 's32[1]{0}', space=sflag, size = 0x4, scoped, tag = 'scoped memory for tpu_custom_call.1']
    #allocation8 [shape = 'u8[6144]{0}', space=vmem, size = 0x1800, scoped, tag = 'input window, operand 4, single buffered']
    #allocation9 [shape = 'u8[98304]{0}', space=vmem, size = 0x18000, scoped, tag = 'input window, operand 11, single buffered']
    #allocation10 [shape = 's32[1]{0}', space=sflag, size = 0x4, scoped, tag = 'scoped memory for tpu_custom_call.1']
    #allocation11 [shape = 'u8[98304]{0}', space=vmem, size = 0x18000, scoped, tag = 'input window, operand 13, single buffered']
    #allocation12 [shape = 'u8[16384]{0}', space=vmem, size = 0x4000, scoped, tag = 'output window, operand 0']
    %20 = vsyncpa [#allocation4], 0
    %s21 = scalar_lea.sflag [#allocation4], 1
    %22 = vsyncpa %s21, 0
    %23 = vsyncpa [#allocation7], 0
    %24 = vsyncpa [#allocation10], 0
    %25 = vsyncpa [#allocation5], 0
    %s26 = scalar_lea.sflag [#allocation5], 1
    %27 = vsyncpa %s26, 0
    loop: start=0, step=1, limit=4
    $region2: #{tpu_custom_call.1} parent=1 // loop_pre_header
      _
    $region3: #{tpu_custom_call.1} parent=1 // loop_header
      %s29 = sphi 0, %s33
      %p30 = scmp.ge.s32.totalorder %s29, 4
      %s39 = sphi 0, %s41
      %s42 = sphi 0, %s39
      %s43 = sphi 0, %s42
      %s59 = sphi 0, %s43
      %s65 = sphi 0, %s67
      %s68 = sphi 0, %s65
      %s69 = sphi 0, %s68
      %s85 = sphi 0, %s69
      %s89 = sphi 0, %s89
      %s91 = sphi 0, %s89
      %s92 = sphi 0, %s91
      %s106 = sphi 0, %s92
      %s110 = sphi 0, %s110
      %s112 = sphi 0, %s110
      %s113 = sphi 0, %s112
      %s127 = sphi 0, %s113
      %s131 = sphi 0, %s131
      %s133 = sphi 0, %s131
      %s134 = sphi 0, %s133
      %s148 = sphi 0, %s134
      %s152 = sphi 0, %s152
      %s154 = sphi 0, %s152
      %s155 = sphi 0, %s154
      %s169 = sphi 0, %s155
      %s173 = sphi 0, %s173
      %s175 = sphi 0, %s173
      %s176 = sphi 0, %s175
      %s190 = sphi 0, %s176
      %s194 = sphi 0, %s194
      %s196 = sphi 0, %s194
      %s197 = sphi 0, %s196
      %s211 = sphi 0, %s197
      %s215 = sphi 0, %s215
      %s217 = sphi 0, %s215
      %s218 = sphi 0, %s217
      %s232 = sphi 0, %s218
      %s236 = sphi 0, %s236
      %s238 = sphi 0, %s236
      %s239 = sphi 0, %s238
      %s253 = sphi 0, %s239
      %s257 = sphi 0, %s257
      %s259 = sphi 0, %s257
      %s260 = sphi 0, %s259
      %s274 = sphi 0, %s260
      %s278 = sphi 0, %s278
      %s280 = sphi 0, %s278
      %s281 = sphi 0, %s280
      %s295 = sphi 0, %s281
      %s299 = sphi 0, %s299
      %s301 = sphi 0, %s299
      %s302 = sphi 0, %s301
      %s316 = sphi 0, %s302
      %s320 = sphi 0, %s320
      %s322 = sphi 0, %s320
      %s323 = sphi 0, %s322
      %s337 = sphi 0, %s323
      %s341 = sphi 0, %s341
      %s343 = sphi 0, %s341
      %s344 = sphi 0, %s343
      %s358 = sphi 0, %s344
      %s364 = sphi 0, %s366
      %s367 = sphi 0, %s364
      %s368 = sphi 0, %s367
      %s384 = sphi 0, %s368
    $region4: #{tpu_custom_call.1} parent=1 // loop_header_branch
      %32 = sbr.rel (%p30) target = $region8
    $region5: #{tpu_custom_call.1} parent=1 // loop_body
      %s34 = ssub.s32 %s29, 1
      %s35 = ssub.s32 %s29, 2
      %s36 = sadd.s32 %s29, 1
      %s37 = ssub.s32 %s29, %s36
      %p38 = scmp.eq.s32.totalorder %s37, 0
      %s40 = sadd.s32 %s39, 1
      %s41 = scalar_select %p38, %s39, %s40
      %p44 = pneg %p38
      %p45 = scmp.eq.s32.totalorder %s29, 1
      %p46 = por %p44, %p45
      %p47 = scmp.ne.s32.totalorder %s39, %s42
      %p48 = scmp.eq.s32.totalorder %s29, 0
      %p49 = por %p47, %p48
      %p50 = scmp.ne.s32.totalorder %s39, %s42
      %p51 = scmp.eq.s32.totalorder %s34, 1
      %p52 = por %p50, %p51
      %p53 = scmp.ne.s32.totalorder %s42, %s43
      %p54 = scmp.eq.s32.totalorder %s34, 0
      %p55 = por %p53, %p54
      %p56 = scmp.ne.s32.totalorder %s42, %s43
      %p57 = scmp.eq.s32.totalorder %s35, 1
      %p58 = por %p56, %p57
      %p60 = scmp.ne.s32.totalorder %s43, %s59
      %p61 = scmp.eq.s32.totalorder %s35, 0
      %p62 = por %p60, %p61
      %s63 = ssub.s32 %s29, %s36
      %p64 = scmp.eq.s32.totalorder %s63, 0
      %s66 = sadd.s32 %s65, 1
      %s67 = scalar_select %p64, %s65, %s66
      %p70 = pneg %p64
      %p71 = scmp.eq.s32.totalorder %s29, 1
      %p72 = por %p70, %p71
      %p73 = scmp.ne.s32.totalorder %s65, %s68
      %p74 = scmp.eq.s32.totalorder %s29, 0
      %p75 = por %p73, %p74
      %p76 = scmp.ne.s32.totalorder %s65, %s68
      %p77 = scmp.eq.s32.totalorder %s34, 1
      %p78 = por %p76, %p77
      %p79 = scmp.ne.s32.totalorder %s68, %s69
      %p80 = scmp.eq.s32.totalorder %s34, 0
      %p81 = por %p79, %p80
      %p82 = scmp.ne.s32.totalorder %s68, %s69
      %p83 = scmp.eq.s32.totalorder %s35, 1
      %p84 = por %p82, %p83
      %p86 = scmp.ne.s32.totalorder %s69, %s85
      %p87 = scmp.eq.s32.totalorder %s35, 0
      %p88 = por %p86, %p87
      %s90 = sadd.s32 %s89, 1
      %p93 = scmp.eq.s32.totalorder %s29, 1
      %p94 = scmp.ne.s32.totalorder %s89, %s91
      %p95 = scmp.eq.s32.totalorder %s29, 0
      %p96 = por %p94, %p95
      %p97 = scmp.ne.s32.totalorder %s89, %s91
      %p98 = scmp.eq.s32.totalorder %s34, 1
      %p99 = por %p97, %p98
      %p100 = scmp.ne.s32.totalorder %s91, %s92
      %p101 = scmp.eq.s32.totalorder %s34, 0
      %p102 = por %p100, %p101
      %p103 = scmp.ne.s32.totalorder %s91, %s92
      %p104 = scmp.eq.s32.totalorder %s35, 1
      %p105 = por %p103, %p104
      %p107 = scmp.ne.s32.totalorder %s92, %s106
      %p108 = scmp.eq.s32.totalorder %s35, 0
      %p109 = por %p107, %p108
      %s111 = sadd.s32 %s110, 1
      %p114 = scmp.eq.s32.totalorder %s29, 1
      %p115 = scmp.ne.s32.totalorder %s110, %s112
      %p116 = scmp.eq.s32.totalorder %s29, 0
      %p117 = por %p115, %p116
      %p118 = scmp.ne.s32.totalorder %s110, %s112
      %p119 = scmp.eq.s32.totalorder %s34, 1
      %p120 = por %p118, %p119
      %p121 = scmp.ne.s32.totalorder %s112, %s113
      %p122 = scmp.eq.s32.totalorder %s34, 0
      %p123 = por %p121, %p122
      %p124 = scmp.ne.s32.totalorder %s112, %s113
      %p125 = scmp.eq.s32.totalorder %s35, 1
      %p126 = por %p124, %p125
      %p128 = scmp.ne.s32.totalorder %s113, %s127
      %p129 = scmp.eq.s32.totalorder %s35, 0
      %p130 = por %p128, %p129
      %s132 = sadd.s32 %s131, 1
      %p135 = scmp.eq.s32.totalorder %s29, 1
      %p136 = scmp.ne.s32.totalorder %s131, %s133
      %p137 = scmp.eq.s32.totalorder %s29, 0
      %p138 = por %p136, %p137
      %p139 = scmp.ne.s32.totalorder %s131, %s133
      %p140 = scmp.eq.s32.totalorder %s34, 1
      %p141 = por %p139, %p140
      %p142 = scmp.ne.s32.totalorder %s133, %s134
      %p143 = scmp.eq.s32.totalorder %s34, 0
      %p144 = por %p142, %p143
      %p145 = scmp.ne.s32.totalorder %s133, %s134
      %p146 = scmp.eq.s32.totalorder %s35, 1
      %p147 = por %p145, %p146
      %p149 = scmp.ne.s32.totalorder %s134, %s148
      %p150 = scmp.eq.s32.totalorder %s35, 0
      %p151 = por %p149, %p150
      %s153 = sadd.s32 %s152, 1
      %p156 = scmp.eq.s32.totalorder %s29, 1
      %p157 = scmp.ne.s32.totalorder %s152, %s154
      %p158 = scmp.eq.s32.totalorder %s29, 0
      %p159 = por %p157, %p158
      %p160 = scmp.ne.s32.totalorder %s152, %s154
      %p161 = scmp.eq.s32.totalorder %s34, 1
      %p162 = por %p160, %p161
      %p163 = scmp.ne.s32.totalorder %s154, %s155
      %p164 = scmp.eq.s32.totalorder %s34, 0
      %p165 = por %p163, %p164
      %p166 = scmp.ne.s32.totalorder %s154, %s155
      %p167 = scmp.eq.s32.totalorder %s35, 1
      %p168 = por %p166, %p167
      %p170 = scmp.ne.s32.totalorder %s155, %s169
      %p171 = scmp.eq.s32.totalorder %s35, 0
      %p172 = por %p170, %p171
      %s174 = sadd.s32 %s173, 1
      %p177 = scmp.eq.s32.totalorder %s29, 1
      %p178 = scmp.ne.s32.totalorder %s173, %s175
      %p179 = scmp.eq.s32.totalorder %s29, 0
      %p180 = por %p178, %p179
      %p181 = scmp.ne.s32.totalorder %s173, %s175
      %p182 = scmp.eq.s32.totalorder %s34, 1
      %p183 = por %p181, %p182
      %p184 = scmp.ne.s32.totalorder %s175, %s176
      %p185 = scmp.eq.s32.totalorder %s34, 0
      %p186 = por %p184, %p185
      %p187 = scmp.ne.s32.totalorder %s175, %s176
      %p188 = scmp.eq.s32.totalorder %s35, 1
      %p189 = por %p187, %p188
      %p191 = scmp.ne.s32.totalorder %s176, %s190
      %p192 = scmp.eq.s32.totalorder %s35, 0
      %p193 = por %p191, %p192
      %s195 = sadd.s32 %s194, 1
      %p198 = scmp.eq.s32.totalorder %s29, 1
      %p199 = scmp.ne.s32.totalorder %s194, %s196
      %p200 = scmp.eq.s32.totalorder %s29, 0
      %p201 = por %p199, %p200
      %p202 = scmp.ne.s32.totalorder %s194, %s196
      %p203 = scmp.eq.s32.totalorder %s34, 1
      %p204 = por %p202, %p203
      %p205 = scmp.ne.s32.totalorder %s196, %s197
      %p206 = scmp.eq.s32.totalorder %s34, 0
      %p207 = por %p205, %p206
      %p208 = scmp.ne.s32.totalorder %s196, %s197
      %p209 = scmp.eq.s32.totalorder %s35, 1
      %p210 = por %p208, %p209
      %p212 = scmp.ne.s32.totalorder %s197, %s211
      %p213 = scmp.eq.s32.totalorder %s35, 0
      %p214 = por %p212, %p213
      %s216 = sadd.s32 %s215, 1
      %p219 = scmp.eq.s32.totalorder %s29, 1
      %p220 = scmp.ne.s32.totalorder %s215, %s217
      %p221 = scmp.eq.s32.totalorder %s29, 0
      %p222 = por %p220, %p221
      %p223 = scmp.ne.s32.totalorder %s215, %s217
      %p224 = scmp.eq.s32.totalorder %s34, 1
      %p225 = por %p223, %p224
      %p226 = scmp.ne.s32.totalorder %s217, %s218
      %p227 = scmp.eq.s32.totalorder %s34, 0
      %p228 = por %p226, %p227
      %p229 = scmp.ne.s32.totalorder %s217, %s218
      %p230 = scmp.eq.s32.totalorder %s35, 1
      %p231 = por %p229, %p230
      %p233 = scmp.ne.s32.totalorder %s218, %s232
      %p234 = scmp.eq.s32.totalorder %s35, 0
      %p235 = por %p233, %p234
      %s237 = sadd.s32 %s236, 1
      %p240 = scmp.eq.s32.totalorder %s29, 1
      %p241 = scmp.ne.s32.totalorder %s236, %s238
      %p242 = scmp.eq.s32.totalorder %s29, 0
      %p243 = por %p241, %p242
      %p244 = scmp.ne.s32.totalorder %s236, %s238
      %p245 = scmp.eq.s32.totalorder %s34, 1
      %p246 = por %p244, %p245
      %p247 = scmp.ne.s32.totalorder %s238, %s239
      %p248 = scmp.eq.s32.totalorder %s34, 0
      %p249 = por %p247, %p248
      %p250 = scmp.ne.s32.totalorder %s238, %s239
      %p251 = scmp.eq.s32.totalorder %s35, 1
      %p252 = por %p250, %p251
      %p254 = scmp.ne.s32.totalorder %s239, %s253
      %p255 = scmp.eq.s32.totalorder %s35, 0
      %p256 = por %p254, %p255
      %s258 = sadd.s32 %s257, 1
      %p261 = scmp.eq.s32.totalorder %s29, 1
      %p262 = scmp.ne.s32.totalorder %s257, %s259
      %p263 = scmp.eq.s32.totalorder %s29, 0
      %p264 = por %p262, %p263
      %p265 = scmp.ne.s32.totalorder %s257, %s259
      %p266 = scmp.eq.s32.totalorder %s34, 1
      %p267 = por %p265, %p266
      %p268 = scmp.ne.s32.totalorder %s259, %s260
      %p269 = scmp.eq.s32.totalorder %s34, 0
      %p270 = por %p268, %p269
      %p271 = scmp.ne.s32.totalorder %s259, %s260
      %p272 = scmp.eq.s32.totalorder %s35, 1
      %p273 = por %p271, %p272
      %p275 = scmp.ne.s32.totalorder %s260, %s274
      %p276 = scmp.eq.s32.totalorder %s35, 0
      %p277 = por %p275, %p276
      %s279 = sadd.s32 %s278, 1
      %p282 = scmp.eq.s32.totalorder %s29, 1
      %p283 = scmp.ne.s32.totalorder %s278, %s280
      %p284 = scmp.eq.s32.totalorder %s29, 0
      %p285 = por %p283, %p284
      %p286 = scmp.ne.s32.totalorder %s278, %s280
      %p287 = scmp.eq.s32.totalorder %s34, 1
      %p288 = por %p286, %p287
      %p289 = scmp.ne.s32.totalorder %s280, %s281
      %p290 = scmp.eq.s32.totalorder %s34, 0
      %p291 = por %p289, %p290
      %p292 = scmp.ne.s32.totalorder %s280, %s281
      %p293 = scmp.eq.s32.totalorder %s35, 1
      %p294 = por %p292, %p293
      %p296 = scmp.ne.s32.totalorder %s281, %s295
      %p297 = scmp.eq.s32.totalorder %s35, 0
      %p298 = por %p296, %p297
      %s300 = sadd.s32 %s299, 1
      %p303 = scmp.eq.s32.totalorder %s29, 1
      %p304 = scmp.ne.s32.totalorder %s299, %s301
      %p305 = scmp.eq.s32.totalorder %s29, 0
      %p306 = por %p304, %p305
      %p307 = scmp.ne.s32.totalorder %s299, %s301
      %p308 = scmp.eq.s32.totalorder %s34, 1
      %p309 = por %p307, %p308
      %p310 = scmp.ne.s32.totalorder %s301, %s302
      %p311 = scmp.eq.s32.totalorder %s34, 0
      %p312 = por %p310, %p311
      %p313 = scmp.ne.s32.totalorder %s301, %s302
      %p314 = scmp.eq.s32.totalorder %s35, 1
      %p315 = por %p313, %p314
      %p317 = scmp.ne.s32.totalorder %s302, %s316
      %p318 = scmp.eq.s32.totalorder %s35, 0
      %p319 = por %p317, %p318
      %s321 = sadd.s32 %s320, 1
      %p324 = scmp.eq.s32.totalorder %s29, 1
      %p325 = scmp.ne.s32.totalorder %s320, %s322
      %p326 = scmp.eq.s32.totalorder %s29, 0
      %p327 = por %p325, %p326
      %p328 = scmp.ne.s32.totalorder %s320, %s322
      %p329 = scmp.eq.s32.totalorder %s34, 1
      %p330 = por %p328, %p329
      %p331 = scmp.ne.s32.totalorder %s322, %s323
      %p332 = scmp.eq.s32.totalorder %s34, 0
      %p333 = por %p331, %p332
      %p334 = scmp.ne.s32.totalorder %s322, %s323
      %p335 = scmp.eq.s32.totalorder %s35, 1
      %p336 = por %p334, %p335
      %p338 = scmp.ne.s32.totalorder %s323, %s337
      %p339 = scmp.eq.s32.totalorder %s35, 0
      %p340 = por %p338, %p339
      %s342 = sadd.s32 %s341, 1
      %p345 = scmp.eq.s32.totalorder %s29, 1
      %p346 = scmp.ne.s32.totalorder %s341, %s343
      %p347 = scmp.eq.s32.totalorder %s29, 0
      %p348 = por %p346, %p347
      %p349 = scmp.ne.s32.totalorder %s341, %s343
      %p350 = scmp.eq.s32.totalorder %s34, 1
      %p351 = por %p349, %p350
      %p352 = scmp.ne.s32.totalorder %s343, %s344
      %p353 = scmp.eq.s32.totalorder %s34, 0
      %p354 = por %p352, %p353
      %p355 = scmp.ne.s32.totalorder %s343, %s344
      %p356 = scmp.eq.s32.totalorder %s35, 1
      %p357 = por %p355, %p356
      %p359 = scmp.ne.s32.totalorder %s344, %s358
      %p360 = scmp.eq.s32.totalorder %s35, 0
      %p361 = por %p359, %p360
      %s362 = ssub.s32 %s29, %s36
      %p363 = scmp.eq.s32.totalorder %s362, 0
      %s365 = sadd.s32 %s364, 1
      %s366 = scalar_select %p363, %s364, %s365
      %p369 = pneg %p363
      %p370 = scmp.eq.s32.totalorder %s29, 1
      %p371 = por %p369, %p370
      %p372 = scmp.ne.s32.totalorder %s364, %s367
      %p373 = scmp.eq.s32.totalorder %s29, 0
      %p374 = por %p372, %p373
      %p375 = scmp.ne.s32.totalorder %s364, %s367
      %p376 = scmp.eq.s32.totalorder %s34, 1
      %p377 = por %p375, %p376
      %p378 = scmp.ne.s32.totalorder %s367, %s368
      %p379 = scmp.eq.s32.totalorder %s34, 0
      %p380 = por %p378, %p379
      %p381 = scmp.ne.s32.totalorder %s367, %s368
      %p382 = scmp.eq.s32.totalorder %s35, 1
      %p383 = por %p381, %p382
      %p385 = scmp.ne.s32.totalorder %s368, %s384
      %p386 = scmp.eq.s32.totalorder %s35, 0
      %p387 = por %p385, %p386
      %p388 = scmp.le.s32.totalorder 1, %s29
      %p389 = scmp.lt.s32.totalorder %s29, 3
      %p390 = pnand %p388, %p389
      %p391 = pneg %p390
      // Predicated region
      $region9: #{tpu_custom_call.1} parent=5 // pred_check
        _
      $region10: #{tpu_custom_call.1} parent=5 // pred_check_branch
        %393 = sbr.rel (%p390) target = $region12
      $region11: #{tpu_custom_call.1} parent=5 // pred_region
        %s394 = ssub.s32 %s29, 1
        // Predicated region
        $region13: #{tpu_custom_call.1} parent=11 // pred_check
          %p395 = pneg %p102
        $region14: #{tpu_custom_call.1} parent=11 // pred_check_branch
          %397 = sbr.rel (%p395) target = $region16
        $region15: #{tpu_custom_call.1} parent=11 // pred_region
          _
        $region16: #{tpu_custom_call.1} parent=11 // pred_fallthru
          _
        // Predicated region
        $region17: #{tpu_custom_call.1} parent=11 // pred_check
          %p398 = pneg %p123
        $region18: #{tpu_custom_call.1} parent=11 // pred_check_branch
          %400 = sbr.rel (%p398) target = $region20
        $region19: #{tpu_custom_call.1} parent=11 // pred_region
          %402 = vsyncadd [#allocation7], 0
          %s403 = sshll.u32 %s3, 4
          %s404 = int_to_ptr.hbm [resolvable:$true] %s403
          %s405 = sshll.u32 [#allocation6], 4
          %s406 = int_to_ptr.vmem [resolvable:$true] %s405
          %411 = dma.hbm_to_vmem [thread:$0]  %s404, 512, %s406, [#allocation7], 64, 64, 4
        $region20: #{tpu_custom_call.1} parent=11 // pred_fallthru
          _
        // Predicated region
        $region21: #{tpu_custom_call.1} parent=11 // pred_check
          %p412 = pneg %p144
        $region22: #{tpu_custom_call.1} parent=11 // pred_check_branch
          %414 = sbr.rel (%p412) target = $region24
        $region23: #{tpu_custom_call.1} parent=11 // pred_region
          %416 = vsyncadd [#allocation7], 0
          %s417 = sshll.u32 %s4, 4
          %s418 = int_to_ptr.hbm [resolvable:$true] %s417
          %s419 = sshll.u32 [#allocation8], 4
          %s420 = int_to_ptr.vmem [resolvable:$true] %s419
          %425 = dma.hbm_to_vmem [thread:$0]  %s418, 192, %s420, [#allocation7], 64, 64, 4
        $region24: #{tpu_custom_call.1} parent=11 // pred_fallthru
          _
        // Predicated region
        $region25: #{tpu_custom_call.1} parent=11 // pred_check
          %p426 = pneg %p165
        $region26: #{tpu_custom_call.1} parent=11 // pred_check_branch
          %428 = sbr.rel (%p426) target = $region28
        $region27: #{tpu_custom_call.1} parent=11 // pred_region
          _
        $region28: #{tpu_custom_call.1} parent=11 // pred_fallthru
          _
        // Predicated region
        $region29: #{tpu_custom_call.1} parent=11 // pred_check
          %p429 = pneg %p186
        $region30: #{tpu_custom_call.1} parent=11 // pred_check_branch
          %431 = sbr.rel (%p429) target = $region32
        $region31: #{tpu_custom_call.1} parent=11 // pred_region
          _
        $region32: #{tpu_custom_call.1} parent=11 // pred_fallthru
          _
        // Predicated region
        $region33: #{tpu_custom_call.1} parent=11 // pred_check
          %p432 = pneg %p207
        $region34: #{tpu_custom_call.1} parent=11 // pred_check_branch
          %434 = sbr.rel (%p432) target = $region36
        $region35: #{tpu_custom_call.1} parent=11 // pred_region
          _
        $region36: #{tpu_custom_call.1} parent=11 // pred_fallthru
          _
        // Predicated region
        $region37: #{tpu_custom_call.1} parent=11 // pred_check
          %p435 = pneg %p228
        $region38: #{tpu_custom_call.1} parent=11 // pred_check_branch
          %437 = sbr.rel (%p435) target = $region40
        $region39: #{tpu_custom_call.1} parent=11 // pred_region
          _
        $region40: #{tpu_custom_call.1} parent=11 // pred_fallthru
          _
        // Predicated region
        $region41: #{tpu_custom_call.1} parent=11 // pred_check
          %p438 = pneg %p249
        $region42: #{tpu_custom_call.1} parent=11 // pred_check_branch
          %440 = sbr.rel (%p438) target = $region44
        $region43: #{tpu_custom_call.1} parent=11 // pred_region
          _
        $region44: #{tpu_custom_call.1} parent=11 // pred_fallthru
          _
        // Predicated region
        $region45: #{tpu_custom_call.1} parent=11 // pred_check
          %p441 = pneg %p270
        $region46: #{tpu_custom_call.1} parent=11 // pred_check_branch
          %443 = sbr.rel (%p441) target = $region48
        $region47: #{tpu_custom_call.1} parent=11 // pred_region
          _
        $region48: #{tpu_custom_call.1} parent=11 // pred_fallthru
          _
        // Predicated region
        $region49: #{tpu_custom_call.1} parent=11 // pred_check
          %p444 = pneg %p291
        $region50: #{tpu_custom_call.1} parent=11 // pred_check_branch
          %446 = sbr.rel (%p444) target = $region52
        $region51: #{tpu_custom_call.1} parent=11 // pred_region
          %448 = vsyncadd [#allocation10], 0
          %s449 = sshll.u32 %s11, 4
          %s450 = int_to_ptr.hbm [resolvable:$true] %s449
          %s451 = sshll.u32 [#allocation9], 4
          %s452 = int_to_ptr.vmem [resolvable:$true] %s451
          %457 = dma.hbm_to_vmem [thread:$0]  %s450, 3072, %s452, [#allocation10], 64, 64, 4
        $region52: #{tpu_custom_call.1} parent=11 // pred_fallthru
          _
        // Predicated region
        $region53: #{tpu_custom_call.1} parent=11 // pred_check
          %p458 = pneg %p312
        $region54: #{tpu_custom_call.1} parent=11 // pred_check_branch
          %460 = sbr.rel (%p458) target = $region56
        $region55: #{tpu_custom_call.1} parent=11 // pred_region
          _
        $region56: #{tpu_custom_call.1} parent=11 // pred_fallthru
          _
        // Predicated region
        $region57: #{tpu_custom_call.1} parent=11 // pred_check
          %p461 = pneg %p333
        $region58: #{tpu_custom_call.1} parent=11 // pred_check_branch
          %463 = sbr.rel (%p461) target = $region60
        $region59: #{tpu_custom_call.1} parent=11 // pred_region
          %465 = vsyncadd [#allocation10], 0
          %s466 = sshll.u32 %s13, 4
          %s467 = int_to_ptr.hbm [resolvable:$true] %s466
          %s468 = sshll.u32 [#allocation11], 4
          %s469 = int_to_ptr.vmem [resolvable:$true] %s468
          %474 = dma.hbm_to_vmem [thread:$0]  %s467, 3072, %s469, [#allocation10], 64, 64, 4
        $region60: #{tpu_custom_call.1} parent=11 // pred_fallthru
          _
        // Predicated region
        $region61: #{tpu_custom_call.1} parent=11 // pred_check
          %p475 = pneg %p354
        $region62: #{tpu_custom_call.1} parent=11 // pred_check_branch
          %477 = sbr.rel (%p475) target = $region64
        $region63: #{tpu_custom_call.1} parent=11 // pred_region
          _
        $region64: #{tpu_custom_call.1} parent=11 // pred_fallthru
          _
      $region12: #{tpu_custom_call.1} parent=5 // pred_fallthru
        _
      %p478 = scmp.lt.s32.totalorder %s29, 2
      // Predicated region
      $region65: #{tpu_custom_call.1} parent=5 // pred_check
        %p479 = pneg %p478
      $region66: #{tpu_custom_call.1} parent=5 // pred_check_branch
        %481 = sbr.rel (%p479) target = $region68
      $region67: #{tpu_custom_call.1} parent=5 // pred_region
        // Predicated region
        $region69: #{tpu_custom_call.1} parent=67 // pred_check
          %p482 = pneg %p49
        $region70: #{tpu_custom_call.1} parent=67 // pred_check_branch
          %484 = sbr.rel (%p482) target = $region72
        $region71: #{tpu_custom_call.1} parent=67 // pred_region
          %p485 = scmp.lt.s32.totalorder %s29, 1
          %s486 = scalar_select %p485, %s29, 1
          %s487 = smul.addr %s486, 8
          %s488 = scalar_lea.vmem %s0, %s487
        $region72: #{tpu_custom_call.1} parent=67 // pred_fallthru
          _
        // Predicated region
        $region73: #{tpu_custom_call.1} parent=67 // pred_check
          %p489 = pneg %p75
        $region74: #{tpu_custom_call.1} parent=67 // pred_check_branch
          %491 = sbr.rel (%p489) target = $region76
        $region75: #{tpu_custom_call.1} parent=67 // pred_region
          %s492 = sand.u32 %s65, 1
          %s493 = scalar_lea.sflag [#allocation4], %s492
          %s494 = sand.u32 %s65, 1
          %s495 = smul.addr %s494, 16
          %s496 = scalar_lea.vmem [#allocation3], %s495
          %498 = vsyncadd %s493, 0
          %s499 = smul.addr %s29, 2
          %s500 = smul.addr %s499, 8
          %s501 = scalar_lea.hbm %s1, %s500
          %s502 = sshll.u32 %s501, 4
          %s503 = int_to_ptr.hbm [resolvable:$true] %s502
          %s504 = sshll.u32 %s496, 4
          %s505 = int_to_ptr.vmem [resolvable:$true] %s504
          %510 = dma.hbm_to_vmem [thread:$0]  %s503, 256, %s505, %s493, 128, 128, 8
        $region76: #{tpu_custom_call.1} parent=67 // pred_fallthru
          _
      $region68: #{tpu_custom_call.1} parent=5 // pred_fallthru
        _
      %p511 = scmp.le.s32.totalorder 1, %s29
      %p512 = scmp.lt.s32.totalorder %s29, 3
      %p513 = pnand %p511, %p512
      %p514 = pneg %p513
      // Predicated region
      $region77: #{tpu_custom_call.1} parent=5 // pred_check
        _
      $region78: #{tpu_custom_call.1} parent=5 // pred_check_branch
        %516 = sbr.rel (%p513) target = $region80
      $region79: #{tpu_custom_call.1} parent=5 // pred_region
        %s517 = ssub.s32 %s29, 1
        %s518 = sand.u32 %s68, 1
        %s519 = scalar_lea.sflag [#allocation4], %s518
        %s520 = sand.u32 %s68, 1
        %s521 = smul.addr %s520, 16
        %s522 = scalar_lea.vmem [#allocation3], %s521
        // Predicated region
        $region81: #{tpu_custom_call.1} parent=79 // pred_check
          %p523 = pneg %p81
        $region82: #{tpu_custom_call.1} parent=79 // pred_check_branch
          %525 = sbr.rel (%p523) target = $region84
        $region83: #{tpu_custom_call.1} parent=79 // pred_region
          %527 = dma.done %s519, 256
        $region84: #{tpu_custom_call.1} parent=79 // pred_fallthru
          _
        // Predicated region
        $region85: #{tpu_custom_call.1} parent=79 // pred_check
          %p528 = pneg %p123
        $region86: #{tpu_custom_call.1} parent=79 // pred_check_branch
          %530 = sbr.rel (%p528) target = $region88
        $region87: #{tpu_custom_call.1} parent=79 // pred_region
          %532 = dma.done [#allocation7], 512
        $region88: #{tpu_custom_call.1} parent=79 // pred_fallthru
          _
        // Predicated region
        $region89: #{tpu_custom_call.1} parent=79 // pred_check
          %p533 = pneg %p144
        $region90: #{tpu_custom_call.1} parent=79 // pred_check_branch
          %535 = sbr.rel (%p533) target = $region92
        $region91: #{tpu_custom_call.1} parent=79 // pred_region
          %537 = dma.done [#allocation7], 192
        $region92: #{tpu_custom_call.1} parent=79 // pred_fallthru
          _
        // Predicated region
        $region93: #{tpu_custom_call.1} parent=79 // pred_check
          %p538 = pneg %p291
        $region94: #{tpu_custom_call.1} parent=79 // pred_check_branch
          %540 = sbr.rel (%p538) target = $region96
        $region95: #{tpu_custom_call.1} parent=79 // pred_region
          %542 = dma.done [#allocation10], 3072
        $region96: #{tpu_custom_call.1} parent=79 // pred_fallthru
          _
        // Predicated region
        $region97: #{tpu_custom_call.1} parent=79 // pred_check
          %p543 = pneg %p333
        $region98: #{tpu_custom_call.1} parent=79 // pred_check_branch
          %545 = sbr.rel (%p543) target = $region100
        $region99: #{tpu_custom_call.1} parent=79 // pred_region
          %547 = dma.done [#allocation10], 3072
        $region100: #{tpu_custom_call.1} parent=79 // pred_fallthru
          _
        %p548 = scmp.lt.s32.totalorder %s34, 1
        %s549 = scalar_select %p548, %s34, 1
        %s550 = smul.addr %s549, 8
        %s551 = scalar_lea.vmem %s0, %s550
        %p552 = pneg %p55
        %p553 = pneg %p52
        %s554 = sand.u32 %s68, 1
        %s555 = scalar_lea.sflag [#allocation4], %s554
        %s556 = sand.u32 %s68, 1
        %s557 = smul.addr %s556, 16
        %s558 = scalar_lea.vmem [#allocation3], %s557
        %p559 = pneg %p81
        %p560 = pneg %p78
        %p561 = pneg %p102
        %p562 = pneg %p99
        %p563 = pneg %p123
        %p564 = pneg %p120
        %p565 = pneg %p144
        %p566 = pneg %p141
        %p567 = pneg %p165
        %p568 = pneg %p162
        %p569 = pneg %p186
        %p570 = pneg %p183
        %p571 = pneg %p207
        %p572 = pneg %p204
        %p573 = pneg %p228
        %p574 = pneg %p225
        %p575 = pneg %p249
        %p576 = pneg %p246
        %p577 = pneg %p270
        %p578 = pneg %p267
        %p579 = pneg %p291
        %p580 = pneg %p288
        %p581 = pneg %p312
        %p582 = pneg %p309
        %p583 = pneg %p333
        %p584 = pneg %p330
        %p585 = pneg %p354
        %p586 = pneg %p351
        %p587 = pneg %p380
        %p588 = pneg %p377
        %s589 = sand.u32 %s367, 1
        %s590 = scalar_lea.sflag [#allocation5], %s589
        %s591 = sand.u32 %s367, 1
        %s592 = smul.addr %s591, 16
        %s593 = scalar_lea.vmem [#allocation12], %s592
        %p594 = scmp.lt.s32.totalorder %s34, 1
        %s595 = scalar_select %p594, %s34, 1
        %s596 = smul.addr %s595, 8
        %s597 = scalar_lea.vmem %s0, %s596
        %v599 = vld [vmem:[%s597] sm:$0xff]
        %v600 = vld [vmem:[%s522] sm:$0xff]
        %v601 = vld [vmem:[%s522 + $0x8] sm:$0xff]
        %v602 = vld [vmem:[%s2] sm:$0xf]
        %v603 = vld [vmem:[%s2 + $0x4] sm:$0xf]
        %v604 = vpack.c.bf16 %v599, %v599
        %v607 = vunpack.c.l.b16 %v602
        %v608 = vunpack.c.l.b16 %v603
        %v609 = vpack.c.b16 %v608, %v607
        %vm610 = vcmask 64512
        %v612 = vsel %vm610, %v609, 0
        %vm614 = vcmask 1043456
        %v616 = vsel %vm614, %v604, 0
        %618 = vmatpush.bf16.msra.mxu0 0
        %619 = vmatpush.bf16.msra.mxu0 0
        %620 = vmatpush.bf16.msra.mxu0 0
        %621 = vmatpush.bf16.msra.mxu0 0
        %622 = vmatpush.bf16.msra.mxu0 0
        %623 = vmatpush.bf16.msra.mxu0 0
        %624 = vmatpush.bf16.msra.mxu0 0
        %625 = vmatpush.bf16.msra.mxu0 %v616
        %626 = vmatmul.bf16.gmra.mxu0 %v612
        %v627 = vpop.f32.mrf.mxu0
        %v628 = vadd.f32 0.0, %v627
        %v629 = vpop.f32.mrf.mxu0
        %v630 = vadd.f32 0.0, %v629
        %631 = vdwg.mxu0
        %v632 = vpack.c.bf16 %v630, %v628
        %v633 = vld [vmem:[#allocation6] sm:$0xf]
        %v634 = vld [vmem:[#allocation6 + $0x4] sm:$0xf]
        %v635 = vld [vmem:[#allocation6 + $0x8] sm:$0xf]
        %v636 = vld [vmem:[#allocation6 + $0xc] sm:$0xf]
        %v637 = vld [vmem:[#allocation6 + $0x10] sm:$0xf]
        %v638 = vld [vmem:[#allocation6 + $0x14] sm:$0xf]
        %v639 = vld [vmem:[#allocation6 + $0x18] sm:$0xf]
        %v640 = vld [vmem:[#allocation6 + $0x1c] sm:$0xf]
        %v649 = vunpack.c.l.b16 %v633
        %v650 = vunpack.c.l.b16 %v634
        %v651 = vunpack.c.l.b16 %v635
        %v652 = vunpack.c.l.b16 %v636
        %v653 = vunpack.c.l.b16 %v637
        %v654 = vunpack.c.l.b16 %v638
        %v655 = vunpack.c.l.b16 %v639
        %v656 = vunpack.c.l.b16 %v640
        %v657 = vpack.c.b16 %v650, %v649
        %v658 = vpack.c.b16 %v652, %v651
        %v659 = vpack.c.b16 %v654, %v653
        %v660 = vpack.c.b16 %v656, %v655
        %vm665 = vcmask 523264
        %v667 = vsel %vm665, %v632, 0
        %669 = vmatpush.bf16.msra.mxu0 0
        %670 = vmatpush.bf16.msra.mxu0 0
        %671 = vmatpush.bf16.msra.mxu0 0
        %672 = vmatpush.bf16.msra.mxu0 0
        %673 = vmatpush.bf16.msra.mxu0 %v660
        %674 = vmatpush.bf16.msra.mxu0 %v659
        %675 = vmatpush.bf16.msra.mxu0 %v658
        %676 = vmatpush.bf16.msra.mxu0 %v657
        %677 = vmatmul.bf16.gmra.mxu0 %v667
        %v678 = vpop.f32.mrf.mxu0
        %v679 = vadd.f32 0.0, %v678
        %v680 = vpop.f32.mrf.mxu0
        %v681 = vadd.f32 0.0, %v680
        %682 = vdwg.mxu0
        %683 = vst [vmem:[#allocation2] sm:$0xff] 0.0
        %684 = vst [vmem:[#allocation2 + $0x8] sm:$0xff] 0.0
        %685 = vst [vmem:[#allocation2 + $0x10] sm:$0x3] 0.0
        %686 = vst [vmem:[#allocation2 + $0x1] sm:$0xff] %v600
        %687 = vst [vmem:[#allocation2 + $0x9] sm:$0xff] %v601
        %v688 = vld [vmem:[#allocation2] sm:$0xff]
        %v689 = vld [vmem:[#allocation2 + $0x8] sm:$0xff]
        %v690 = vld [vmem:[#allocation2 + $0x10] sm:$0x3]
        %v691 = vpack.c.bf16 %v689, %v688
        %v692 = vpack.c.bf16 %v690, %v690
        %v693 = vld [vmem:[#allocation8] sm:$0xf]
        %vm694 = vcmask 146432
        %v696 = vsel %vm694, %v693, 0
        %vm698 = vcmask 1040384
        %v700 = vsel %vm698, %v692, 0
        %702 = vmatpush.bf16.msra.mxu0 0
        %703 = vmatpush.bf16.msra.mxu0 0
        %704 = vmatpush.bf16.msra.mxu0 0
        %705 = vmatpush.bf16.msra.mxu0 0
        %706 = vmatpush.bf16.msra.mxu0 0
        %707 = vmatpush.bf16.msra.mxu0 0
        %708 = vmatpush.bf16.msra.mxu0 %v700
        %709 = vmatpush.bf16.msra.mxu0 %v691
        %710 = vmatmul.bf16.gmra.mxu0 %v696
        %v711 = vpop.f32.mrf.mxu0
        %v712 = vadd.f32 0.0, %v711
        %v713 = vpop.f32.mrf.mxu0
        %714 = vdwg.mxu0
        %v715 = vpack.c.bf16 %v712, %v712
        %s716 = scalar_lea.vmem [#allocation8], 4
        %v717 = vld [vmem:[%s716] sm:$0xf]
        %v719 = vsel %vm694, %v717, 0
        %721 = vmatpush.bf16.msra.mxu0 0
        %722 = vmatpush.bf16.msra.mxu0 0
        %723 = vmatpush.bf16.msra.mxu0 0
        %724 = vmatpush.bf16.msra.mxu0 0
        %725 = vmatpush.bf16.msra.mxu0 0
        %726 = vmatpush.bf16.msra.mxu0 0
        %727 = vmatpush.bf16.msra.mxu0 %v700
        %728 = vmatpush.bf16.msra.mxu0 %v691
        %729 = vmatmul.bf16.gmra.mxu0 %v719
        %v730 = vpop.f32.mrf.mxu0
        %v731 = vadd.f32 0.0, %v730
        %v732 = vpop.f32.mrf.mxu0
        %733 = vdwg.mxu0
        %v734 = vpack.c.bf16 %v731, %v731
        %s735 = scalar_lea.vmem [#allocation8], 8
        %v736 = vld [vmem:[%s735] sm:$0xf]
        %v738 = vsel %vm694, %v736, 0
        %740 = vmatpush.bf16.msra.mxu0 0
        %741 = vmatpush.bf16.msra.mxu0 0
        %742 = vmatpush.bf16.msra.mxu0 0
        %743 = vmatpush.bf16.msra.mxu0 0
        %744 = vmatpush.bf16.msra.mxu0 0
        %745 = vmatpush.bf16.msra.mxu0 0
        %746 = vmatpush.bf16.msra.mxu0 %v700
        %747 = vmatpush.bf16.msra.mxu0 %v691
        %748 = vmatmul.bf16.gmra.mxu0 %v738
        %v749 = vpop.f32.mrf.mxu0
        %v750 = vadd.f32 0.0, %v749
        %v751 = vpop.f32.mrf.mxu0
        %752 = vdwg.mxu0
        %v753 = vpack.c.bf16 %v750, %v750
        %v754 = vld [vmem:[%s5] sm:$0xf]
        %v755 = vld [vmem:[%s5 + $0x4] sm:$0xf]
        %v756 = vld [vmem:[%s5 + $0x8] sm:$0xf]
        %v757 = vld [vmem:[%s5 + $0xc] sm:$0xf]
        %v758 = vld [vmem:[%s5 + $0x10] sm:$0xf]
        %v759 = vld [vmem:[%s5 + $0x14] sm:$0xf]
        %v760 = vld [vmem:[%s5 + $0x18] sm:$0xf]
        %v761 = vld [vmem:[%s5 + $0x1c] sm:$0xf]
        %v762 = vld [vmem:[%s5 + $0x20] sm:$0xf]
        %v763 = vld [vmem:[%s5 + $0x24] sm:$0xf]
        %v764 = vld [vmem:[%s5 + $0x28] sm:$0xf]
        %v765 = vld [vmem:[%s5 + $0x2c] sm:$0xf]
        %v766 = vld [vmem:[%s5 + $0x30] sm:$0xf]
        %v767 = vld [vmem:[%s5 + $0x34] sm:$0xf]
        %v768 = vld [vmem:[%s5 + $0x38] sm:$0xf]
        %v769 = vld [vmem:[%s5 + $0x3c] sm:$0xf]
        %s770 = scalar_lea.vmem %s5, 64
        %v771 = vld [vmem:[%s770] sm:$0xf]
        %v772 = vld [vmem:[%s770 + $0x4] sm:$0xf]
        %v773 = vld [vmem:[%s770 + $0x8] sm:$0xf]
        %v774 = vld [vmem:[%s770 + $0xc] sm:$0xf]
        %v775 = vld [vmem:[%s770 + $0x10] sm:$0xf]
        %v776 = vld [vmem:[%s770 + $0x14] sm:$0xf]
        %v777 = vld [vmem:[%s770 + $0x18] sm:$0xf]
        %v778 = vld [vmem:[%s770 + $0x1c] sm:$0xf]
        %v779 = vld [vmem:[%s770 + $0x20] sm:$0xf]
        %v780 = vld [vmem:[%s770 + $0x24] sm:$0xf]
        %v781 = vld [vmem:[%s770 + $0x28] sm:$0xf]
        %v782 = vld [vmem:[%s770 + $0x2c] sm:$0xf]
        %v783 = vld [vmem:[%s770 + $0x30] sm:$0xf]
        %v784 = vld [vmem:[%s770 + $0x34] sm:$0xf]
        %v785 = vld [vmem:[%s770 + $0x38] sm:$0xf]
        %v786 = vld [vmem:[%s770 + $0x3c] sm:$0xf]
        %v803 = vunpack.c.l.b16 %v771
        %v804 = vunpack.c.l.b16 %v772
        %v805 = vunpack.c.l.b16 %v773
        %v806 = vunpack.c.l.b16 %v774
        %v807 = vunpack.c.l.b16 %v775
        %v808 = vunpack.c.l.b16 %v776
        %v809 = vunpack.c.l.b16 %v777
        %v810 = vunpack.c.l.b16 %v778
        %v811 = vunpack.c.l.b16 %v779
        %v812 = vunpack.c.l.b16 %v780
        %v813 = vunpack.c.l.b16 %v781
        %v814 = vunpack.c.l.b16 %v782
        %v815 = vunpack.c.l.b16 %v783
        %v816 = vunpack.c.l.b16 %v784
        %v817 = vunpack.c.l.b16 %v785
        %v818 = vunpack.c.l.b16 %v786
        %v819 = vpack.c.b16 %v804, %v803
        %v820 = vpack.c.b16 %v806, %v805
        %v821 = vpack.c.b16 %v808, %v807
        %v822 = vpack.c.b16 %v810, %v809
        %v823 = vpack.c.b16 %v812, %v811
        %v824 = vpack.c.b16 %v814, %v813
        %v825 = vpack.c.b16 %v816, %v815
        %v826 = vpack.c.b16 %v818, %v817
        %835 = vmatpush.bf16.msra.mxu0 %v826
        %836 = vmatpush.bf16.msra.mxu0 %v825
        %837 = vmatpush.bf16.msra.mxu0 %v824
        %838 = vmatpush.bf16.msra.mxu0 %v823
        %839 = vmatpush.bf16.msra.mxu0 %v822
        %840 = vmatpush.bf16.msra.mxu0 %v821
        %841 = vmatpush.bf16.msra.mxu0 %v820
        %842 = vmatpush.bf16.msra.mxu0 %v819
        %843 = vmatmul.bf16.gmra.mxu0 %v734
        %v844 = vpop.f32.mrf.mxu0
        %v845 = vadd.f32 0.0, %v844
        %v846 = vpop.f32.mrf.mxu0
        %847 = vdwg.mxu0
        %v864 = vunpack.c.l.b16 %v754
        %v865 = vunpack.c.l.b16 %v755
        %v866 = vunpack.c.l.b16 %v756
        %v867 = vunpack.c.l.b16 %v757
        %v868 = vunpack.c.l.b16 %v758
        %v869 = vunpack.c.l.b16 %v759
        %v870 = vunpack.c.l.b16 %v760
        %v871 = vunpack.c.l.b16 %v761
        %v872 = vunpack.c.l.b16 %v762
        %v873 = vunpack.c.l.b16 %v763
        %v874 = vunpack.c.l.b16 %v764
        %v875 = vunpack.c.l.b16 %v765
        %v876 = vunpack.c.l.b16 %v766
        %v877 = vunpack.c.l.b16 %v767
        %v878 = vunpack.c.l.b16 %v768
        %v879 = vunpack.c.l.b16 %v769
        %v880 = vpack.c.b16 %v865, %v864
        %v881 = vpack.c.b16 %v867, %v866
        %v882 = vpack.c.b16 %v869, %v868
        %v883 = vpack.c.b16 %v871, %v870
        %v884 = vpack.c.b16 %v873, %v872
        %v885 = vpack.c.b16 %v875, %v874
        %v886 = vpack.c.b16 %v877, %v876
        %v887 = vpack.c.b16 %v879, %v878
        %896 = vmatpush.bf16.msra.mxu0 %v887
        %897 = vmatpush.bf16.msra.mxu0 %v886
        %898 = vmatpush.bf16.msra.mxu0 %v885
        %899 = vmatpush.bf16.msra.mxu0 %v884
        %900 = vmatpush.bf16.msra.mxu0 %v883
        %901 = vmatpush.bf16.msra.mxu0 %v882
        %902 = vmatpush.bf16.msra.mxu0 %v881
        %903 = vmatpush.bf16.msra.mxu0 %v880
        %904 = vmatmul.bf16.gmra.mxu0 %v715
        %v905 = vpop.f32.mrf.mxu0
        %v906 = vadd.f32 %v845, %v905
        %v907 = vpop.f32.mrf.mxu0
        %908 = vdwg.mxu0
        %s909 = scalar_lea.vmem %s5, 128
        %v910 = vld [vmem:[%s909] sm:$0xf]
        %v911 = vld [vmem:[%s909 + $0x4] sm:$0xf]
        %v912 = vld [vmem:[%s909 + $0x8] sm:$0xf]
        %v913 = vld [vmem:[%s909 + $0xc] sm:$0xf]
        %v914 = vld [vmem:[%s909 + $0x10] sm:$0xf]
        %v915 = vld [vmem:[%s909 + $0x14] sm:$0xf]
        %v916 = vld [vmem:[%s909 + $0x18] sm:$0xf]
        %v917 = vld [vmem:[%s909 + $0x1c] sm:$0xf]
        %v918 = vld [vmem:[%s909 + $0x20] sm:$0xf]
        %v919 = vld [vmem:[%s909 + $0x24] sm:$0xf]
        %v920 = vld [vmem:[%s909 + $0x28] sm:$0xf]
        %v921 = vld [vmem:[%s909 + $0x2c] sm:$0xf]
        %v922 = vld [vmem:[%s909 + $0x30] sm:$0xf]
        %v923 = vld [vmem:[%s909 + $0x34] sm:$0xf]
        %v924 = vld [vmem:[%s909 + $0x38] sm:$0xf]
        %v925 = vld [vmem:[%s909 + $0x3c] sm:$0xf]
        %v942 = vunpack.c.l.b16 %v910
        %v943 = vunpack.c.l.b16 %v911
        %v944 = vunpack.c.l.b16 %v912
        %v945 = vunpack.c.l.b16 %v913
        %v946 = vunpack.c.l.b16 %v914
        %v947 = vunpack.c.l.b16 %v915
        %v948 = vunpack.c.l.b16 %v916
        %v949 = vunpack.c.l.b16 %v917
        %v950 = vunpack.c.l.b16 %v918
        %v951 = vunpack.c.l.b16 %v919
        %v952 = vunpack.c.l.b16 %v920
        %v953 = vunpack.c.l.b16 %v921
        %v954 = vunpack.c.l.b16 %v922
        %v955 = vunpack.c.l.b16 %v923
        %v956 = vunpack.c.l.b16 %v924
        %v957 = vunpack.c.l.b16 %v925
        %v958 = vpack.c.b16 %v943, %v942
        %v959 = vpack.c.b16 %v945, %v944
        %v960 = vpack.c.b16 %v947, %v946
        %v961 = vpack.c.b16 %v949, %v948
        %v962 = vpack.c.b16 %v951, %v950
        %v963 = vpack.c.b16 %v953, %v952
        %v964 = vpack.c.b16 %v955, %v954
        %v965 = vpack.c.b16 %v957, %v956
        %974 = vmatpush.bf16.msra.mxu0 %v965
        %975 = vmatpush.bf16.msra.mxu0 %v964
        %976 = vmatpush.bf16.msra.mxu0 %v963
        %977 = vmatpush.bf16.msra.mxu0 %v962
        %978 = vmatpush.bf16.msra.mxu0 %v961
        %979 = vmatpush.bf16.msra.mxu0 %v960
        %980 = vmatpush.bf16.msra.mxu0 %v959
        %981 = vmatpush.bf16.msra.mxu0 %v958
        %982 = vmatmul.bf16.gmra.mxu0 %v753
        %v983 = vpop.f32.mrf.mxu0
        %v984 = vadd.f32 0.0, %v983
        %v985 = vpop.f32.mrf.mxu0
        %986 = vdwg.mxu0
        %v987 = vadd.f32 %v906, %v984
        %v988 = vld [vmem:[%s6] sm:$0x1]
        %v990 = vperm.slane %v988, 0
        %v992 = vadd.f32 %v987, %v990
        %v993 = vmax.f32 %v992, 0.0
        %v994 = vmul.f32 %v600, %v679
        %v995 = vmul.f32 %v601, %v681
        %996 = vst [vmem:[#allocation2] sm:$0xff] 0.0
        %997 = vst [vmem:[#allocation2 + $0x8] sm:$0xff] 0.0
        %998 = vst [vmem:[#allocation2 + $0x10] sm:$0x3] 0.0
        %999 = vst [vmem:[#allocation2 + $0x1] sm:$0xff] %v994
        %1000 = vst [vmem:[#allocation2 + $0x9] sm:$0xff] %v995
        %v1001 = vld [vmem:[#allocation2] sm:$0xff]
        %v1002 = vld [vmem:[#allocation2 + $0x8] sm:$0xff]
        %v1003 = vpack.c.bf16 %v1002, %v1001
        %v1004 = vld [vmem:[#allocation2 + $0x1] sm:$0xff]
        %v1005 = vld [vmem:[#allocation2 + $0x9] sm:$0xff]
        %v1006 = vpack.c.bf16 %v1005, %v1004
        %v1007 = vld [vmem:[#allocation2 + $0x2] sm:$0xff]
        %v1008 = vld [vmem:[#allocation2 + $0xa] sm:$0xff]
        %v1009 = vpack.c.bf16 %v1008, %v1007
        %v1010 = vld [vmem:[%s7] sm:$0xf]
        %v1011 = vld [vmem:[%s7 + $0x4] sm:$0xf]
        %v1012 = vld [vmem:[%s7 + $0x8] sm:$0xf]
        %v1013 = vld [vmem:[%s7 + $0xc] sm:$0xf]
        %v1014 = vld [vmem:[%s7 + $0x10] sm:$0xf]
        %v1015 = vld [vmem:[%s7 + $0x14] sm:$0xf]
        %v1016 = vld [vmem:[%s7 + $0x18] sm:$0xf]
        %v1017 = vld [vmem:[%s7 + $0x1c] sm:$0xf]
        %v1018 = vld [vmem:[%s7 + $0x20] sm:$0xf]
        %v1019 = vld [vmem:[%s7 + $0x24] sm:$0xf]
        %v1020 = vld [vmem:[%s7 + $0x28] sm:$0xf]
        %v1021 = vld [vmem:[%s7 + $0x2c] sm:$0xf]
        %v1022 = vld [vmem:[%s7 + $0x30] sm:$0xf]
        %v1023 = vld [vmem:[%s7 + $0x34] sm:$0xf]
        %v1024 = vld [vmem:[%s7 + $0x38] sm:$0xf]
        %v1025 = vld [vmem:[%s7 + $0x3c] sm:$0xf]
        %s1026 = scalar_lea.vmem %s7, 64
        %v1027 = vld [vmem:[%s1026] sm:$0xf]
        %v1028 = vld [vmem:[%s1026 + $0x4] sm:$0xf]
        %v1029 = vld [vmem:[%s1026 + $0x8] sm:$0xf]
        %v1030 = vld [vmem:[%s1026 + $0xc] sm:$0xf]
        %v1031 = vld [vmem:[%s1026 + $0x10] sm:$0xf]
        %v1032 = vld [vmem:[%s1026 + $0x14] sm:$0xf]
        %v1033 = vld [vmem:[%s1026 + $0x18] sm:$0xf]
        %v1034 = vld [vmem:[%s1026 + $0x1c] sm:$0xf]
        %v1035 = vld [vmem:[%s1026 + $0x20] sm:$0xf]
        %v1036 = vld [vmem:[%s1026 + $0x24] sm:$0xf]
        %v1037 = vld [vmem:[%s1026 + $0x28] sm:$0xf]
        %v1038 = vld [vmem:[%s1026 + $0x2c] sm:$0xf]
        %v1039 = vld [vmem:[%s1026 + $0x30] sm:$0xf]
        %v1040 = vld [vmem:[%s1026 + $0x34] sm:$0xf]
        %v1041 = vld [vmem:[%s1026 + $0x38] sm:$0xf]
        %v1042 = vld [vmem:[%s1026 + $0x3c] sm:$0xf]
        %v1059 = vunpack.c.l.b16 %v1027
        %v1060 = vunpack.c.l.b16 %v1028
        %v1061 = vunpack.c.l.b16 %v1029
        %v1062 = vunpack.c.l.b16 %v1030
        %v1063 = vunpack.c.l.b16 %v1031
        %v1064 = vunpack.c.l.b16 %v1032
        %v1065 = vunpack.c.l.b16 %v1033
        %v1066 = vunpack.c.l.b16 %v1034
        %v1067 = vunpack.c.l.b16 %v1035
        %v1068 = vunpack.c.l.b16 %v1036
        %v1069 = vunpack.c.l.b16 %v1037
        %v1070 = vunpack.c.l.b16 %v1038
        %v1071 = vunpack.c.l.b16 %v1039
        %v1072 = vunpack.c.l.b16 %v1040
        %v1073 = vunpack.c.l.b16 %v1041
        %v1074 = vunpack.c.l.b16 %v1042
        %v1075 = vpack.c.b16 %v1060, %v1059
        %v1076 = vpack.c.b16 %v1062, %v1061
        %v1077 = vpack.c.b16 %v1064, %v1063
        %v1078 = vpack.c.b16 %v1066, %v1065
        %v1079 = vpack.c.b16 %v1068, %v1067
        %v1080 = vpack.c.b16 %v1070, %v1069
        %v1081 = vpack.c.b16 %v1072, %v1071
        %v1082 = vpack.c.b16 %v1074, %v1073
        %1091 = vmatpush.bf16.msra.mxu0 %v1082
        %1092 = vmatpush.bf16.msra.mxu0 %v1081
        %1093 = vmatpush.bf16.msra.mxu0 %v1080
        %1094 = vmatpush.bf16.msra.mxu0 %v1079
        %1095 = vmatpush.bf16.msra.mxu0 %v1078
        %1096 = vmatpush.bf16.msra.mxu0 %v1077
        %1097 = vmatpush.bf16.msra.mxu0 %v1076
        %1098 = vmatpush.bf16.msra.mxu0 %v1075
        %1099 = vmatmul.bf16.gmra.mxu0 %v1006
        %v1100 = vpop.f32.mrf.mxu0
        %v1101 = vadd.f32 0.0, %v1100
        %v1102 = vpop.f32.mrf.mxu0
        %v1103 = vadd.f32 0.0, %v1102
        %1104 = vdwg.mxu0
        %v1121 = vunpack.c.l.b16 %v1010
        %v1122 = vunpack.c.l.b16 %v1011
        %v1123 = vunpack.c.l.b16 %v1012
        %v1124 = vunpack.c.l.b16 %v1013
        %v1125 = vunpack.c.l.b16 %v1014
        %v1126 = vunpack.c.l.b16 %v1015
        %v1127 = vunpack.c.l.b16 %v1016
        %v1128 = vunpack.c.l.b16 %v1017
        %v1129 = vunpack.c.l.b16 %v1018
        %v1130 = vunpack.c.l.b16 %v1019
        %v1131 = vunpack.c.l.b16 %v1020
        %v1132 = vunpack.c.l.b16 %v1021
        %v1133 = vunpack.c.l.b16 %v1022
        %v1134 = vunpack.c.l.b16 %v1023
        %v1135 = vunpack.c.l.b16 %v1024
        %v1136 = vunpack.c.l.b16 %v1025
        %v1137 = vpack.c.b16 %v1122, %v1121
        %v1138 = vpack.c.b16 %v1124, %v1123
        %v1139 = vpack.c.b16 %v1126, %v1125
        %v1140 = vpack.c.b16 %v1128, %v1127
        %v1141 = vpack.c.b16 %v1130, %v1129
        %v1142 = vpack.c.b16 %v1132, %v1131
        %v1143 = vpack.c.b16 %v1134, %v1133
        %v1144 = vpack.c.b16 %v1136, %v1135
        %1153 = vmatpush.bf16.msra.mxu0 %v1144
        %1154 = vmatpush.bf16.msra.mxu0 %v1143
        %1155 = vmatpush.bf16.msra.mxu0 %v1142
        %1156 = vmatpush.bf16.msra.mxu0 %v1141
        %1157 = vmatpush.bf16.msra.mxu0 %v1140
        %1158 = vmatpush.bf16.msra.mxu0 %v1139
        %1159 = vmatpush.bf16.msra.mxu0 %v1138
        %1160 = vmatpush.bf16.msra.mxu0 %v1137
        %1161 = vmatmul.bf16.gmra.mxu0 %v1003
        %v1162 = vpop.f32.mrf.mxu0
        %v1163 = vadd.f32 %v1101, %v1162
        %v1164 = vpop.f32.mrf.mxu0
        %v1165 = vadd.f32 %v1103, %v1164
        %1166 = vdwg.mxu0
        %s1167 = scalar_lea.vmem %s7, 128
        %v1168 = vld [vmem:[%s1167] sm:$0xf]
        %v1169 = vld [vmem:[%s1167 + $0x4] sm:$0xf]
        %v1170 = vld [vmem:[%s1167 + $0x8] sm:$0xf]
        %v1171 = vld [vmem:[%s1167 + $0xc] sm:$0xf]
        %v1172 = vld [vmem:[%s1167 + $0x10] sm:$0xf]
        %v1173 = vld [vmem:[%s1167 + $0x14] sm:$0xf]
        %v1174 = vld [vmem:[%s1167 + $0x18] sm:$0xf]
        %v1175 = vld [vmem:[%s1167 + $0x1c] sm:$0xf]
        %v1176 = vld [vmem:[%s1167 + $0x20] sm:$0xf]
        %v1177 = vld [vmem:[%s1167 + $0x24] sm:$0xf]
        %v1178 = vld [vmem:[%s1167 + $0x28] sm:$0xf]
        %v1179 = vld [vmem:[%s1167 + $0x2c] sm:$0xf]
        %v1180 = vld [vmem:[%s1167 + $0x30] sm:$0xf]
        %v1181 = vld [vmem:[%s1167 + $0x34] sm:$0xf]
        %v1182 = vld [vmem:[%s1167 + $0x38] sm:$0xf]
        %v1183 = vld [vmem:[%s1167 + $0x3c] sm:$0xf]
        %v1200 = vunpack.c.l.b16 %v1168
        %v1201 = vunpack.c.l.b16 %v1169
        %v1202 = vunpack.c.l.b16 %v1170
        %v1203 = vunpack.c.l.b16 %v1171
        %v1204 = vunpack.c.l.b16 %v1172
        %v1205 = vunpack.c.l.b16 %v1173
        %v1206 = vunpack.c.l.b16 %v1174
        %v1207 = vunpack.c.l.b16 %v1175
        %v1208 = vunpack.c.l.b16 %v1176
        %v1209 = vunpack.c.l.b16 %v1177
        %v1210 = vunpack.c.l.b16 %v1178
        %v1211 = vunpack.c.l.b16 %v1179
        %v1212 = vunpack.c.l.b16 %v1180
        %v1213 = vunpack.c.l.b16 %v1181
        %v1214 = vunpack.c.l.b16 %v1182
        %v1215 = vunpack.c.l.b16 %v1183
        %v1216 = vpack.c.b16 %v1201, %v1200
        %v1217 = vpack.c.b16 %v1203, %v1202
        %v1218 = vpack.c.b16 %v1205, %v1204
        %v1219 = vpack.c.b16 %v1207, %v1206
        %v1220 = vpack.c.b16 %v1209, %v1208
        %v1221 = vpack.c.b16 %v1211, %v1210
        %v1222 = vpack.c.b16 %v1213, %v1212
        %v1223 = vpack.c.b16 %v1215, %v1214
        %1232 = vmatpush.bf16.msra.mxu0 %v1223
        %1233 = vmatpush.bf16.msra.mxu0 %v1222
        %1234 = vmatpush.bf16.msra.mxu0 %v1221
        %1235 = vmatpush.bf16.msra.mxu0 %v1220
        %1236 = vmatpush.bf16.msra.mxu0 %v1219
        %1237 = vmatpush.bf16.msra.mxu0 %v1218
        %1238 = vmatpush.bf16.msra.mxu0 %v1217
        %1239 = vmatpush.bf16.msra.mxu0 %v1216
        %1240 = vmatmul.bf16.gmra.mxu0 %v1009
        %v1241 = vpop.f32.mrf.mxu0
        %v1242 = vadd.f32 0.0, %v1241
        %v1243 = vpop.f32.mrf.mxu0
        %v1244 = vadd.f32 0.0, %v1243
        %1245 = vdwg.mxu0
        %v1246 = vadd.f32 %v1163, %v1242
        %v1247 = vadd.f32 %v1165, %v1244
        %v1248 = vld [vmem:[%s8] sm:$0x1]
        %v1250 = vperm.slane %v1248, 0
        %v1252 = vadd.f32 %v1246, %v1250
        %v1253 = vadd.f32 %v1247, %v1250
        %v1254 = vmax.f32 %v1252, 0.0
        %v1255 = vmax.f32 %v1253, 0.0
        %v1256 = vmul.f32 %v993, %v599
        %1257 = vst [vmem:[#allocation2] sm:$0xff] 0.0
        %1258 = vst [vmem:[#allocation2 + $0x8] sm:$0xff] 0.0
        %1259 = vst [vmem:[#allocation2 + $0x10] sm:$0x3] 0.0
        %1260 = vst.msk [vmem:[#allocation2 + $0x1] sm:$0xff] %vm665, %v1256
        %v1261 = vld [vmem:[#allocation2] sm:$0xff]
        %v1262 = vpack.c.bf16 %v1261, %v1261
        %v1263 = vld [vmem:[#allocation2 + $0x1] sm:$0xff]
        %v1264 = vpack.c.bf16 %v1263, %v1263
        %v1265 = vld [vmem:[#allocation2 + $0x2] sm:$0xff]
        %v1266 = vpack.c.bf16 %v1265, %v1265
        %v1267 = vld [vmem:[%s9] sm:$0xf]
        %v1268 = vld [vmem:[%s9 + $0x4] sm:$0xf]
        %v1269 = vld [vmem:[%s9 + $0x8] sm:$0xf]
        %v1270 = vld [vmem:[%s9 + $0xc] sm:$0xf]
        %v1271 = vld [vmem:[%s9 + $0x10] sm:$0xf]
        %v1272 = vld [vmem:[%s9 + $0x14] sm:$0xf]
        %v1273 = vld [vmem:[%s9 + $0x18] sm:$0xf]
        %v1274 = vld [vmem:[%s9 + $0x1c] sm:$0xf]
        %s1275 = scalar_lea.vmem %s9, 32
        %v1276 = vld [vmem:[%s1275] sm:$0xf]
        %v1277 = vld [vmem:[%s1275 + $0x4] sm:$0xf]
        %v1278 = vld [vmem:[%s1275 + $0x8] sm:$0xf]
        %v1279 = vld [vmem:[%s1275 + $0xc] sm:$0xf]
        %v1280 = vld [vmem:[%s1275 + $0x10] sm:$0xf]
        %v1281 = vld [vmem:[%s1275 + $0x14] sm:$0xf]
        %v1282 = vld [vmem:[%s1275 + $0x18] sm:$0xf]
        %v1283 = vld [vmem:[%s1275 + $0x1c] sm:$0xf]
        %v1292 = vunpack.c.l.b16 %v1276
        %v1293 = vunpack.c.l.b16 %v1277
        %v1294 = vunpack.c.l.b16 %v1278
        %v1295 = vunpack.c.l.b16 %v1279
        %v1296 = vunpack.c.l.b16 %v1280
        %v1297 = vunpack.c.l.b16 %v1281
        %v1298 = vunpack.c.l.b16 %v1282
        %v1299 = vunpack.c.l.b16 %v1283
        %v1300 = vpack.c.b16 %v1293, %v1292
        %v1301 = vpack.c.b16 %v1295, %v1294
        %v1302 = vpack.c.b16 %v1297, %v1296
        %v1303 = vpack.c.b16 %v1299, %v1298
        %v1309 = vsel %vm665, %v1264, 0
        %1311 = vmatpush.bf16.msra.mxu0 0
        %1312 = vmatpush.bf16.msra.mxu0 0
        %1313 = vmatpush.bf16.msra.mxu0 0
        %1314 = vmatpush.bf16.msra.mxu0 0
        %1315 = vmatpush.bf16.msra.mxu0 %v1303
        %1316 = vmatpush.bf16.msra.mxu0 %v1302
        %1317 = vmatpush.bf16.msra.mxu0 %v1301
        %1318 = vmatpush.bf16.msra.mxu0 %v1300
        %1319 = vmatmul.bf16.gmra.mxu0 %v1309
        %v1320 = vpop.f32.mrf.mxu0
        %v1321 = vadd.f32 0.0, %v1320
        %v1322 = vpop.f32.mrf.mxu0
        %1323 = vdwg.mxu0
        %v1332 = vunpack.c.l.b16 %v1267
        %v1333 = vunpack.c.l.b16 %v1268
        %v1334 = vunpack.c.l.b16 %v1269
        %v1335 = vunpack.c.l.b16 %v1270
        %v1336 = vunpack.c.l.b16 %v1271
        %v1337 = vunpack.c.l.b16 %v1272
        %v1338 = vunpack.c.l.b16 %v1273
        %v1339 = vunpack.c.l.b16 %v1274
        %v1340 = vpack.c.b16 %v1333, %v1332
        %v1341 = vpack.c.b16 %v1335, %v1334
        %v1342 = vpack.c.b16 %v1337, %v1336
        %v1343 = vpack.c.b16 %v1339, %v1338
        %v1349 = vsel %vm665, %v1262, 0
        %1351 = vmatpush.bf16.msra.mxu0 0
        %1352 = vmatpush.bf16.msra.mxu0 0
        %1353 = vmatpush.bf16.msra.mxu0 0
        %1354 = vmatpush.bf16.msra.mxu0 0
        %1355 = vmatpush.bf16.msra.mxu0 %v1343
        %1356 = vmatpush.bf16.msra.mxu0 %v1342
        %1357 = vmatpush.bf16.msra.mxu0 %v1341
        %1358 = vmatpush.bf16.msra.mxu0 %v1340
        %1359 = vmatmul.bf16.gmra.mxu0 %v1349
        %v1360 = vpop.f32.mrf.mxu0
        %v1361 = vadd.f32 %v1321, %v1360
        %v1362 = vpop.f32.mrf.mxu0
        %1363 = vdwg.mxu0
        %s1364 = scalar_lea.vmem %s9, 64
        %v1365 = vld [vmem:[%s1364] sm:$0xf]
        %v1366 = vld [vmem:[%s1364 + $0x4] sm:$0xf]
        %v1367 = vld [vmem:[%s1364 + $0x8] sm:$0xf]
        %v1368 = vld [vmem:[%s1364 + $0xc] sm:$0xf]
        %v1369 = vld [vmem:[%s1364 + $0x10] sm:$0xf]
        %v1370 = vld [vmem:[%s1364 + $0x14] sm:$0xf]
        %v1371 = vld [vmem:[%s1364 + $0x18] sm:$0xf]
        %v1372 = vld [vmem:[%s1364 + $0x1c] sm:$0xf]
        %v1381 = vunpack.c.l.b16 %v1365
        %v1382 = vunpack.c.l.b16 %v1366
        %v1383 = vunpack.c.l.b16 %v1367
        %v1384 = vunpack.c.l.b16 %v1368
        %v1385 = vunpack.c.l.b16 %v1369
        %v1386 = vunpack.c.l.b16 %v1370
        %v1387 = vunpack.c.l.b16 %v1371
        %v1388 = vunpack.c.l.b16 %v1372
        %v1389 = vpack.c.b16 %v1382, %v1381
        %v1390 = vpack.c.b16 %v1384, %v1383
        %v1391 = vpack.c.b16 %v1386, %v1385
        %v1392 = vpack.c.b16 %v1388, %v1387
        %v1398 = vsel %vm665, %v1266, 0
        %1400 = vmatpush.bf16.msra.mxu0 0
        %1401 = vmatpush.bf16.msra.mxu0 0
        %1402 = vmatpush.bf16.msra.mxu0 0
        %1403 = vmatpush.bf16.msra.mxu0 0
        %1404 = vmatpush.bf16.msra.mxu0 %v1392
        %1405 = vmatpush.bf16.msra.mxu0 %v1391
        %1406 = vmatpush.bf16.msra.mxu0 %v1390
        %1407 = vmatpush.bf16.msra.mxu0 %v1389
        %1408 = vmatmul.bf16.gmra.mxu0 %v1398
        %v1409 = vpop.f32.mrf.mxu0
        %v1410 = vadd.f32 0.0, %v1409
        %v1411 = vpop.f32.mrf.mxu0
        %1412 = vdwg.mxu0
        %v1413 = vadd.f32 %v1361, %v1410
        %v1414 = vld [vmem:[%s10] sm:$0x1]
        %v1416 = vperm.slane %v1414, 0
        %v1418 = vadd.f32 %v1413, %v1416
        %v1419 = vmax.f32 %v1418, 0.0
        %v1420 = vld [vmem:[%s2] sm:$0xf]
        %v1421 = vld [vmem:[%s2 + $0x4] sm:$0xf]
        %v1422 = vpack.c.bf16 %v1419, %v1419
        %v1425 = vunpack.c.l.b16 %v1420
        %v1426 = vunpack.c.l.b16 %v1421
        %v1427 = vpack.c.b16 %v1426, %v1425
        %v1429 = vsel %vm610, %v1427, 0
        %v1432 = vsel %vm614, %v1422, 0
        %1434 = vmatpush.bf16.msra.mxu0 0
        %1435 = vmatpush.bf16.msra.mxu0 0
        %1436 = vmatpush.bf16.msra.mxu0 0
        %1437 = vmatpush.bf16.msra.mxu0 0
        %1438 = vmatpush.bf16.msra.mxu0 0
        %1439 = vmatpush.bf16.msra.mxu0 0
        %1440 = vmatpush.bf16.msra.mxu0 0
        %1441 = vmatpush.bf16.msra.mxu0 %v1432
        %1442 = vmatmul.bf16.gmra.mxu0 %v1429
        %v1443 = vpop.f32.mrf.mxu0
        %v1444 = vadd.f32 0.0, %v1443
        %v1445 = vpop.f32.mrf.mxu0
        %v1446 = vadd.f32 0.0, %v1445
        %1447 = vdwg.mxu0
        %v1448 = vpack.c.bf16 %v1446, %v1444
        %v1449 = vld [vmem:[#allocation6] sm:$0xf]
        %v1450 = vld [vmem:[#allocation6 + $0x4] sm:$0xf]
        %v1451 = vld [vmem:[#allocation6 + $0x8] sm:$0xf]
        %v1452 = vld [vmem:[#allocation6 + $0xc] sm:$0xf]
        %v1453 = vld [vmem:[#allocation6 + $0x10] sm:$0xf]
        %v1454 = vld [vmem:[#allocation6 + $0x14] sm:$0xf]
        %v1455 = vld [vmem:[#allocation6 + $0x18] sm:$0xf]
        %v1456 = vld [vmem:[#allocation6 + $0x1c] sm:$0xf]
        %v1465 = vunpack.c.l.b16 %v1449
        %v1466 = vunpack.c.l.b16 %v1450
        %v1467 = vunpack.c.l.b16 %v1451
        %v1468 = vunpack.c.l.b16 %v1452
        %v1469 = vunpack.c.l.b16 %v1453
        %v1470 = vunpack.c.l.b16 %v1454
        %v1471 = vunpack.c.l.b16 %v1455
        %v1472 = vunpack.c.l.b16 %v1456
        %v1473 = vpack.c.b16 %v1466, %v1465
        %v1474 = vpack.c.b16 %v1468, %v1467
        %v1475 = vpack.c.b16 %v1470, %v1469
        %v1476 = vpack.c.b16 %v1472, %v1471
        %v1482 = vsel %vm665, %v1448, 0
        %1484 = vmatpush.bf16.msra.mxu0 0
        %1485 = vmatpush.bf16.msra.mxu0 0
        %1486 = vmatpush.bf16.msra.mxu0 0
        %1487 = vmatpush.bf16.msra.mxu0 0
        %1488 = vmatpush.bf16.msra.mxu0 %v1476
        %1489 = vmatpush.bf16.msra.mxu0 %v1475
        %1490 = vmatpush.bf16.msra.mxu0 %v1474
        %1491 = vmatpush.bf16.msra.mxu0 %v1473
        %1492 = vmatmul.bf16.gmra.mxu0 %v1482
        %v1493 = vpop.f32.mrf.mxu0
        %v1494 = vadd.f32 0.0, %v1493
        %v1495 = vpop.f32.mrf.mxu0
        %v1496 = vadd.f32 0.0, %v1495
        %1497 = vdwg.mxu0
        %v1498 = vmul.f32 %v1254, %v1494
        %v1499 = vmul.f32 %v1255, %v1496
        %1500 = vst [vmem:[#allocation2] sm:$0xff] 0.0
        %1501 = vst [vmem:[#allocation2 + $0x8] sm:$0xff] 0.0
        %1502 = vst [vmem:[#allocation2 + $0x10] sm:$0x3] 0.0
        %1503 = vst [vmem:[#allocation2 + $0x1] sm:$0xff] %v1498
        %1504 = vst [vmem:[#allocation2 + $0x9] sm:$0xff] %v1499
        %v1505 = vld [vmem:[#allocation2] sm:$0xff]
        %v1506 = vld [vmem:[#allocation2 + $0x8] sm:$0xff]
        %v1507 = vpack.c.bf16 %v1506, %v1505
        %v1508 = vld [vmem:[#allocation2 + $0x1] sm:$0xff]
        %v1509 = vld [vmem:[#allocation2 + $0x9] sm:$0xff]
        %v1510 = vpack.c.bf16 %v1509, %v1508
        %v1511 = vld [vmem:[#allocation2 + $0x2] sm:$0xff]
        %v1512 = vld [vmem:[#allocation2 + $0xa] sm:$0xff]
        %v1513 = vpack.c.bf16 %v1512, %v1511
        %v1514 = vld [vmem:[#allocation9] sm:$0xf]
        %v1515 = vld [vmem:[#allocation9 + $0x4] sm:$0xf]
        %v1516 = vld [vmem:[#allocation9 + $0x8] sm:$0xf]
        %v1517 = vld [vmem:[#allocation9 + $0xc] sm:$0xf]
        %v1518 = vld [vmem:[#allocation9 + $0x10] sm:$0xf]
        %v1519 = vld [vmem:[#allocation9 + $0x14] sm:$0xf]
        %v1520 = vld [vmem:[#allocation9 + $0x18] sm:$0xf]
        %v1521 = vld [vmem:[#allocation9 + $0x1c] sm:$0xf]
        %v1522 = vld [vmem:[#allocation9 + $0x20] sm:$0xf]
        %v1523 = vld [vmem:[#allocation9 + $0x24] sm:$0xf]
        %v1524 = vld [vmem:[#allocation9 + $0x28] sm:$0xf]
        %v1525 = vld [vmem:[#allocation9 + $0x2c] sm:$0xf]
        %v1526 = vld [vmem:[#allocation9 + $0x30] sm:$0xf]
        %v1527 = vld [vmem:[#allocation9 + $0x34] sm:$0xf]
        %v1528 = vld [vmem:[#allocation9 + $0x38] sm:$0xf]
        %v1529 = vld [vmem:[#allocation9 + $0x3c] sm:$0xf]
        %s1530 = scalar_lea.vmem [#allocation9], 64
        %v1531 = vld [vmem:[%s1530] sm:$0xf]
        %v1532 = vld [vmem:[%s1530 + $0x4] sm:$0xf]
        %v1533 = vld [vmem:[%s1530 + $0x8] sm:$0xf]
        %v1534 = vld [vmem:[%s1530 + $0xc] sm:$0xf]
        %v1535 = vld [vmem:[%s1530 + $0x10] sm:$0xf]
        %v1536 = vld [vmem:[%s1530 + $0x14] sm:$0xf]
        %v1537 = vld [vmem:[%s1530 + $0x18] sm:$0xf]
        %v1538 = vld [vmem:[%s1530 + $0x1c] sm:$0xf]
        %v1539 = vld [vmem:[%s1530 + $0x20] sm:$0xf]
        %v1540 = vld [vmem:[%s1530 + $0x24] sm:$0xf]
        %v1541 = vld [vmem:[%s1530 + $0x28] sm:$0xf]
        %v1542 = vld [vmem:[%s1530 + $0x2c] sm:$0xf]
        %v1543 = vld [vmem:[%s1530 + $0x30] sm:$0xf]
        %v1544 = vld [vmem:[%s1530 + $0x34] sm:$0xf]
        %v1545 = vld [vmem:[%s1530 + $0x38] sm:$0xf]
        %v1546 = vld [vmem:[%s1530 + $0x3c] sm:$0xf]
        %v1563 = vunpack.c.l.b16 %v1531
        %v1564 = vunpack.c.l.b16 %v1532
        %v1565 = vunpack.c.l.b16 %v1533
        %v1566 = vunpack.c.l.b16 %v1534
        %v1567 = vunpack.c.l.b16 %v1535
        %v1568 = vunpack.c.l.b16 %v1536
        %v1569 = vunpack.c.l.b16 %v1537
        %v1570 = vunpack.c.l.b16 %v1538
        %v1571 = vunpack.c.l.b16 %v1539
        %v1572 = vunpack.c.l.b16 %v1540
        %v1573 = vunpack.c.l.b16 %v1541
        %v1574 = vunpack.c.l.b16 %v1542
        %v1575 = vunpack.c.l.b16 %v1543
        %v1576 = vunpack.c.l.b16 %v1544
        %v1577 = vunpack.c.l.b16 %v1545
        %v1578 = vunpack.c.l.b16 %v1546
        %v1579 = vpack.c.b16 %v1564, %v1563
        %v1580 = vpack.c.b16 %v1566, %v1565
        %v1581 = vpack.c.b16 %v1568, %v1567
        %v1582 = vpack.c.b16 %v1570, %v1569
        %v1583 = vpack.c.b16 %v1572, %v1571
        %v1584 = vpack.c.b16 %v1574, %v1573
        %v1585 = vpack.c.b16 %v1576, %v1575
        %v1586 = vpack.c.b16 %v1578, %v1577
        %1595 = vmatpush.bf16.msra.mxu0 %v1586
        %1596 = vmatpush.bf16.msra.mxu0 %v1585
        %1597 = vmatpush.bf16.msra.mxu0 %v1584
        %1598 = vmatpush.bf16.msra.mxu0 %v1583
        %1599 = vmatpush.bf16.msra.mxu0 %v1582
        %1600 = vmatpush.bf16.msra.mxu0 %v1581
        %1601 = vmatpush.bf16.msra.mxu0 %v1580
        %1602 = vmatpush.bf16.msra.mxu0 %v1579
        %1603 = vmatmul.bf16.gmra.mxu0 %v1510
        %v1604 = vpop.f32.mrf.mxu0
        %v1605 = vadd.f32 0.0, %v1604
        %v1606 = vpop.f32.mrf.mxu0
        %v1607 = vadd.f32 0.0, %v1606
        %1608 = vdwg.mxu0
        %v1625 = vunpack.c.l.b16 %v1514
        %v1626 = vunpack.c.l.b16 %v1515
        %v1627 = vunpack.c.l.b16 %v1516
        %v1628 = vunpack.c.l.b16 %v1517
        %v1629 = vunpack.c.l.b16 %v1518
        %v1630 = vunpack.c.l.b16 %v1519
        %v1631 = vunpack.c.l.b16 %v1520
        %v1632 = vunpack.c.l.b16 %v1521
        %v1633 = vunpack.c.l.b16 %v1522
        %v1634 = vunpack.c.l.b16 %v1523
        %v1635 = vunpack.c.l.b16 %v1524
        %v1636 = vunpack.c.l.b16 %v1525
        %v1637 = vunpack.c.l.b16 %v1526
        %v1638 = vunpack.c.l.b16 %v1527
        %v1639 = vunpack.c.l.b16 %v1528
        %v1640 = vunpack.c.l.b16 %v1529
        %v1641 = vpack.c.b16 %v1626, %v1625
        %v1642 = vpack.c.b16 %v1628, %v1627
        %v1643 = vpack.c.b16 %v1630, %v1629
        %v1644 = vpack.c.b16 %v1632, %v1631
        %v1645 = vpack.c.b16 %v1634, %v1633
        %v1646 = vpack.c.b16 %v1636, %v1635
        %v1647 = vpack.c.b16 %v1638, %v1637
        %v1648 = vpack.c.b16 %v1640, %v1639
        %1657 = vmatpush.bf16.msra.mxu0 %v1648
        %1658 = vmatpush.bf16.msra.mxu0 %v1647
        %1659 = vmatpush.bf16.msra.mxu0 %v1646
        %1660 = vmatpush.bf16.msra.mxu0 %v1645
        %1661 = vmatpush.bf16.msra.mxu0 %v1644
        %1662 = vmatpush.bf16.msra.mxu0 %v1643
        %1663 = vmatpush.bf16.msra.mxu0 %v1642
        %1664 = vmatpush.bf16.msra.mxu0 %v1641
        %1665 = vmatmul.bf16.gmra.mxu0 %v1507
        %v1666 = vpop.f32.mrf.mxu0
        %v1667 = vadd.f32 %v1605, %v1666
        %v1668 = vpop.f32.mrf.mxu0
        %v1669 = vadd.f32 %v1607, %v1668
        %1670 = vdwg.mxu0
        %s1671 = scalar_lea.vmem [#allocation9], 128
        %v1672 = vld [vmem:[%s1671] sm:$0xf]
        %v1673 = vld [vmem:[%s1671 + $0x4] sm:$0xf]
        %v1674 = vld [vmem:[%s1671 + $0x8] sm:$0xf]
        %v1675 = vld [vmem:[%s1671 + $0xc] sm:$0xf]
        %v1676 = vld [vmem:[%s1671 + $0x10] sm:$0xf]
        %v1677 = vld [vmem:[%s1671 + $0x14] sm:$0xf]
        %v1678 = vld [vmem:[%s1671 + $0x18] sm:$0xf]
        %v1679 = vld [vmem:[%s1671 + $0x1c] sm:$0xf]
        %v1680 = vld [vmem:[%s1671 + $0x20] sm:$0xf]
        %v1681 = vld [vmem:[%s1671 + $0x24] sm:$0xf]
        %v1682 = vld [vmem:[%s1671 + $0x28] sm:$0xf]
        %v1683 = vld [vmem:[%s1671 + $0x2c] sm:$0xf]
        %v1684 = vld [vmem:[%s1671 + $0x30] sm:$0xf]
        %v1685 = vld [vmem:[%s1671 + $0x34] sm:$0xf]
        %v1686 = vld [vmem:[%s1671 + $0x38] sm:$0xf]
        %v1687 = vld [vmem:[%s1671 + $0x3c] sm:$0xf]
        %v1704 = vunpack.c.l.b16 %v1672
        %v1705 = vunpack.c.l.b16 %v1673
        %v1706 = vunpack.c.l.b16 %v1674
        %v1707 = vunpack.c.l.b16 %v1675
        %v1708 = vunpack.c.l.b16 %v1676
        %v1709 = vunpack.c.l.b16 %v1677
        %v1710 = vunpack.c.l.b16 %v1678
        %v1711 = vunpack.c.l.b16 %v1679
        %v1712 = vunpack.c.l.b16 %v1680
        %v1713 = vunpack.c.l.b16 %v1681
        %v1714 = vunpack.c.l.b16 %v1682
        %v1715 = vunpack.c.l.b16 %v1683
        %v1716 = vunpack.c.l.b16 %v1684
        %v1717 = vunpack.c.l.b16 %v1685
        %v1718 = vunpack.c.l.b16 %v1686
        %v1719 = vunpack.c.l.b16 %v1687
        %v1720 = vpack.c.b16 %v1705, %v1704
        %v1721 = vpack.c.b16 %v1707, %v1706
        %v1722 = vpack.c.b16 %v1709, %v1708
        %v1723 = vpack.c.b16 %v1711, %v1710
        %v1724 = vpack.c.b16 %v1713, %v1712
        %v1725 = vpack.c.b16 %v1715, %v1714
        %v1726 = vpack.c.b16 %v1717, %v1716
        %v1727 = vpack.c.b16 %v1719, %v1718
        %1736 = vmatpush.bf16.msra.mxu0 %v1727
        %1737 = vmatpush.bf16.msra.mxu0 %v1726
        %1738 = vmatpush.bf16.msra.mxu0 %v1725
        %1739 = vmatpush.bf16.msra.mxu0 %v1724
        %1740 = vmatpush.bf16.msra.mxu0 %v1723
        %1741 = vmatpush.bf16.msra.mxu0 %v1722
        %1742 = vmatpush.bf16.msra.mxu0 %v1721
        %1743 = vmatpush.bf16.msra.mxu0 %v1720
        %1744 = vmatmul.bf16.gmra.mxu0 %v1513
        %v1745 = vpop.f32.mrf.mxu0
        %v1746 = vadd.f32 0.0, %v1745
        %v1747 = vpop.f32.mrf.mxu0
        %v1748 = vadd.f32 0.0, %v1747
        %1749 = vdwg.mxu0
        %v1750 = vadd.f32 %v1667, %v1746
        %v1751 = vadd.f32 %v1669, %v1748
        %v1752 = vld [vmem:[%s12] sm:$0x1]
        %v1754 = vperm.slane %v1752, 0
        %v1756 = vadd.f32 %v1750, %v1754
        %v1757 = vadd.f32 %v1751, %v1754
        %v1758 = vmax.f32 %v1756, 0.0
        %v1759 = vmax.f32 %v1757, 0.0
        %1760 = vst [vmem:[#allocation2] sm:$0xff] 0.0
        %1761 = vst [vmem:[#allocation2 + $0x8] sm:$0xff] 0.0
        %1762 = vst [vmem:[#allocation2 + $0x10] sm:$0x3] 0.0
        %1763 = vst [vmem:[#allocation2 + $0x1] sm:$0xff] %v1758
        %1764 = vst [vmem:[#allocation2 + $0x9] sm:$0xff] %v1759
        %v1765 = vld [vmem:[#allocation2] sm:$0xff]
        %v1766 = vld [vmem:[#allocation2 + $0x8] sm:$0xff]
        %v1767 = vpack.c.bf16 %v1766, %v1765
        %v1768 = vld [vmem:[#allocation2 + $0x1] sm:$0xff]
        %v1769 = vld [vmem:[#allocation2 + $0x9] sm:$0xff]
        %v1770 = vpack.c.bf16 %v1769, %v1768
        %v1771 = vld [vmem:[#allocation2 + $0x2] sm:$0xff]
        %v1772 = vld [vmem:[#allocation2 + $0xa] sm:$0xff]
        %v1773 = vpack.c.bf16 %v1772, %v1771
        %v1774 = vld [vmem:[#allocation11] sm:$0xf]
        %v1775 = vld [vmem:[#allocation11 + $0x4] sm:$0xf]
        %v1776 = vld [vmem:[#allocation11 + $0x8] sm:$0xf]
        %v1777 = vld [vmem:[#allocation11 + $0xc] sm:$0xf]
        %v1778 = vld [vmem:[#allocation11 + $0x10] sm:$0xf]
        %v1779 = vld [vmem:[#allocation11 + $0x14] sm:$0xf]
        %v1780 = vld [vmem:[#allocation11 + $0x18] sm:$0xf]
        %v1781 = vld [vmem:[#allocation11 + $0x1c] sm:$0xf]
        %v1782 = vld [vmem:[#allocation11 + $0x20] sm:$0xf]
        %v1783 = vld [vmem:[#allocation11 + $0x24] sm:$0xf]
        %v1784 = vld [vmem:[#allocation11 + $0x28] sm:$0xf]
        %v1785 = vld [vmem:[#allocation11 + $0x2c] sm:$0xf]
        %v1786 = vld [vmem:[#allocation11 + $0x30] sm:$0xf]
        %v1787 = vld [vmem:[#allocation11 + $0x34] sm:$0xf]
        %v1788 = vld [vmem:[#allocation11 + $0x38] sm:$0xf]
        %v1789 = vld [vmem:[#allocation11 + $0x3c] sm:$0xf]
        %s1790 = scalar_lea.vmem [#allocation11], 64
        %v1791 = vld [vmem:[%s1790] sm:$0xf]
        %v1792 = vld [vmem:[%s1790 + $0x4] sm:$0xf]
        %v1793 = vld [vmem:[%s1790 + $0x8] sm:$0xf]
        %v1794 = vld [vmem:[%s1790 + $0xc] sm:$0xf]
        %v1795 = vld [vmem:[%s1790 + $0x10] sm:$0xf]
        %v1796 = vld [vmem:[%s1790 + $0x14] sm:$0xf]
        %v1797 = vld [vmem:[%s1790 + $0x18] sm:$0xf]
        %v1798 = vld [vmem:[%s1790 + $0x1c] sm:$0xf]
        %v1799 = vld [vmem:[%s1790 + $0x20] sm:$0xf]
        %v1800 = vld [vmem:[%s1790 + $0x24] sm:$0xf]
        %v1801 = vld [vmem:[%s1790 + $0x28] sm:$0xf]
        %v1802 = vld [vmem:[%s1790 + $0x2c] sm:$0xf]
        %v1803 = vld [vmem:[%s1790 + $0x30] sm:$0xf]
        %v1804 = vld [vmem:[%s1790 + $0x34] sm:$0xf]
        %v1805 = vld [vmem:[%s1790 + $0x38] sm:$0xf]
        %v1806 = vld [vmem:[%s1790 + $0x3c] sm:$0xf]
        %v1823 = vunpack.c.l.b16 %v1791
        %v1824 = vunpack.c.l.b16 %v1792
        %v1825 = vunpack.c.l.b16 %v1793
        %v1826 = vunpack.c.l.b16 %v1794
        %v1827 = vunpack.c.l.b16 %v1795
        %v1828 = vunpack.c.l.b16 %v1796
        %v1829 = vunpack.c.l.b16 %v1797
        %v1830 = vunpack.c.l.b16 %v1798
        %v1831 = vunpack.c.l.b16 %v1799
        %v1832 = vunpack.c.l.b16 %v1800
        %v1833 = vunpack.c.l.b16 %v1801
        %v1834 = vunpack.c.l.b16 %v1802
        %v1835 = vunpack.c.l.b16 %v1803
        %v1836 = vunpack.c.l.b16 %v1804
        %v1837 = vunpack.c.l.b16 %v1805
        %v1838 = vunpack.c.l.b16 %v1806
        %v1839 = vpack.c.b16 %v1824, %v1823
        %v1840 = vpack.c.b16 %v1826, %v1825
        %v1841 = vpack.c.b16 %v1828, %v1827
        %v1842 = vpack.c.b16 %v1830, %v1829
        %v1843 = vpack.c.b16 %v1832, %v1831
        %v1844 = vpack.c.b16 %v1834, %v1833
        %v1845 = vpack.c.b16 %v1836, %v1835
        %v1846 = vpack.c.b16 %v1838, %v1837
        %1855 = vmatpush.bf16.msra.mxu0 %v1846
        %1856 = vmatpush.bf16.msra.mxu0 %v1845
        %1857 = vmatpush.bf16.msra.mxu0 %v1844
        %1858 = vmatpush.bf16.msra.mxu0 %v1843
        %1859 = vmatpush.bf16.msra.mxu0 %v1842
        %1860 = vmatpush.bf16.msra.mxu0 %v1841
        %1861 = vmatpush.bf16.msra.mxu0 %v1840
        %1862 = vmatpush.bf16.msra.mxu0 %v1839
        %1863 = vmatmul.bf16.gmra.mxu0 %v1770
        %v1864 = vpop.f32.mrf.mxu0
        %v1865 = vadd.f32 0.0, %v1864
        %v1866 = vpop.f32.mrf.mxu0
        %v1867 = vadd.f32 0.0, %v1866
        %1868 = vdwg.mxu0
        %v1885 = vunpack.c.l.b16 %v1774
        %v1886 = vunpack.c.l.b16 %v1775
        %v1887 = vunpack.c.l.b16 %v1776
        %v1888 = vunpack.c.l.b16 %v1777
        %v1889 = vunpack.c.l.b16 %v1778
        %v1890 = vunpack.c.l.b16 %v1779
        %v1891 = vunpack.c.l.b16 %v1780
        %v1892 = vunpack.c.l.b16 %v1781
        %v1893 = vunpack.c.l.b16 %v1782
        %v1894 = vunpack.c.l.b16 %v1783
        %v1895 = vunpack.c.l.b16 %v1784
        %v1896 = vunpack.c.l.b16 %v1785
        %v1897 = vunpack.c.l.b16 %v1786
        %v1898 = vunpack.c.l.b16 %v1787
        %v1899 = vunpack.c.l.b16 %v1788
        %v1900 = vunpack.c.l.b16 %v1789
        %v1901 = vpack.c.b16 %v1886, %v1885
        %v1902 = vpack.c.b16 %v1888, %v1887
        %v1903 = vpack.c.b16 %v1890, %v1889
        %v1904 = vpack.c.b16 %v1892, %v1891
        %v1905 = vpack.c.b16 %v1894, %v1893
        %v1906 = vpack.c.b16 %v1896, %v1895
        %v1907 = vpack.c.b16 %v1898, %v1897
        %v1908 = vpack.c.b16 %v1900, %v1899
        %1917 = vmatpush.bf16.msra.mxu0 %v1908
        %1918 = vmatpush.bf16.msra.mxu0 %v1907
        %1919 = vmatpush.bf16.msra.mxu0 %v1906
        %1920 = vmatpush.bf16.msra.mxu0 %v1905
        %1921 = vmatpush.bf16.msra.mxu0 %v1904
        %1922 = vmatpush.bf16.msra.mxu0 %v1903
        %1923 = vmatpush.bf16.msra.mxu0 %v1902
        %1924 = vmatpush.bf16.msra.mxu0 %v1901
        %1925 = vmatmul.bf16.gmra.mxu0 %v1767
        %v1926 = vpop.f32.mrf.mxu0
        %v1927 = vadd.f32 %v1865, %v1926
        %v1928 = vpop.f32.mrf.mxu0
        %v1929 = vadd.f32 %v1867, %v1928
        %1930 = vdwg.mxu0
        %s1931 = scalar_lea.vmem [#allocation11], 128
        %v1932 = vld [vmem:[%s1931] sm:$0xf]
        %v1933 = vld [vmem:[%s1931 + $0x4] sm:$0xf]
        %v1934 = vld [vmem:[%s1931 + $0x8] sm:$0xf]
        %v1935 = vld [vmem:[%s1931 + $0xc] sm:$0xf]
        %v1936 = vld [vmem:[%s1931 + $0x10] sm:$0xf]
        %v1937 = vld [vmem:[%s1931 + $0x14] sm:$0xf]
        %v1938 = vld [vmem:[%s1931 + $0x18] sm:$0xf]
        %v1939 = vld [vmem:[%s1931 + $0x1c] sm:$0xf]
        %v1940 = vld [vmem:[%s1931 + $0x20] sm:$0xf]
        %v1941 = vld [vmem:[%s1931 + $0x24] sm:$0xf]
        %v1942 = vld [vmem:[%s1931 + $0x28] sm:$0xf]
        %v1943 = vld [vmem:[%s1931 + $0x2c] sm:$0xf]
        %v1944 = vld [vmem:[%s1931 + $0x30] sm:$0xf]
        %v1945 = vld [vmem:[%s1931 + $0x34] sm:$0xf]
        %v1946 = vld [vmem:[%s1931 + $0x38] sm:$0xf]
        %v1947 = vld [vmem:[%s1931 + $0x3c] sm:$0xf]
        %v1964 = vunpack.c.l.b16 %v1932
        %v1965 = vunpack.c.l.b16 %v1933
        %v1966 = vunpack.c.l.b16 %v1934
        %v1967 = vunpack.c.l.b16 %v1935
        %v1968 = vunpack.c.l.b16 %v1936
        %v1969 = vunpack.c.l.b16 %v1937
        %v1970 = vunpack.c.l.b16 %v1938
        %v1971 = vunpack.c.l.b16 %v1939
        %v1972 = vunpack.c.l.b16 %v1940
        %v1973 = vunpack.c.l.b16 %v1941
        %v1974 = vunpack.c.l.b16 %v1942
        %v1975 = vunpack.c.l.b16 %v1943
        %v1976 = vunpack.c.l.b16 %v1944
        %v1977 = vunpack.c.l.b16 %v1945
        %v1978 = vunpack.c.l.b16 %v1946
        %v1979 = vunpack.c.l.b16 %v1947
        %v1980 = vpack.c.b16 %v1965, %v1964
        %v1981 = vpack.c.b16 %v1967, %v1966
        %v1982 = vpack.c.b16 %v1969, %v1968
        %v1983 = vpack.c.b16 %v1971, %v1970
        %v1984 = vpack.c.b16 %v1973, %v1972
        %v1985 = vpack.c.b16 %v1975, %v1974
        %v1986 = vpack.c.b16 %v1977, %v1976
        %v1987 = vpack.c.b16 %v1979, %v1978
        %1996 = vmatpush.bf16.msra.mxu0 %v1987
        %1997 = vmatpush.bf16.msra.mxu0 %v1986
        %1998 = vmatpush.bf16.msra.mxu0 %v1985
        %1999 = vmatpush.bf16.msra.mxu0 %v1984
        %2000 = vmatpush.bf16.msra.mxu0 %v1983
        %2001 = vmatpush.bf16.msra.mxu0 %v1982
        %2002 = vmatpush.bf16.msra.mxu0 %v1981
        %2003 = vmatpush.bf16.msra.mxu0 %v1980
        %2004 = vmatmul.bf16.gmra.mxu0 %v1773
        %v2005 = vpop.f32.mrf.mxu0
        %v2006 = vadd.f32 0.0, %v2005
        %v2007 = vpop.f32.mrf.mxu0
        %v2008 = vadd.f32 0.0, %v2007
        %2009 = vdwg.mxu0
        %v2010 = vadd.f32 %v1927, %v2006
        %v2011 = vadd.f32 %v1929, %v2008
        %v2012 = vld [vmem:[%s14] sm:$0x1]
        %v2014 = vperm.slane %v2012, 0
        %v2016 = vadd.f32 %v2010, %v2014
        %v2017 = vadd.f32 %v2011, %v2014
        %v2018 = vmax.f32 %v2016, 0.0
        %v2019 = vmax.f32 %v2017, 0.0
        %2020 = vst [vmem:[%s593] sm:$0xff] %v2018
        %2021 = vst [vmem:[%s593 + $0x8] sm:$0xff] %v2019
        %s2022 = sand.u32 %s367, 1
        %s2023 = scalar_lea.sflag [#allocation5], %s2022
        %s2024 = sand.u32 %s367, 1
        %s2025 = smul.addr %s2024, 16
        %s2026 = scalar_lea.vmem [#allocation12], %s2025
        // Predicated region
        $region101: #{tpu_custom_call.1} parent=79 // pred_check
          %p2027 = pneg %p377
        $region102: #{tpu_custom_call.1} parent=79 // pred_check_branch
          %2029 = sbr.rel (%p2027) target = $region104
        $region103: #{tpu_custom_call.1} parent=79 // pred_region
          %2031 = vsyncadd %s2023, 0
          %s2032 = smul.addr %s34, 2
          %s2033 = smul.addr %s2032, 8
          %s2034 = scalar_lea.hbm %s15, %s2033
          %s2035 = sshll.u32 %s2026, 4
          %s2036 = int_to_ptr.vmem [resolvable:$true] %s2035
          %s2037 = sshll.u32 %s2034, 4
          %s2038 = int_to_ptr.hbm [resolvable:$true] %s2037
          %2043 = dma.vmem_to_hbm [thread:$0]  %s2036, 256, %s2038, %s2023, 128, 128, 8
        $region104: #{tpu_custom_call.1} parent=79 // pred_fallthru
          _
      $region80: #{tpu_custom_call.1} parent=5 // pred_fallthru
        _
      %p2044 = scmp.le.s32.totalorder 2, %s29
      // Predicated region
      $region105: #{tpu_custom_call.1} parent=5 // pred_check
        %p2045 = pneg %p2044
      $region106: #{tpu_custom_call.1} parent=5 // pred_check_branch
        %2047 = sbr.rel (%p2045) target = $region108
      $region107: #{tpu_custom_call.1} parent=5 // pred_region
        %s2048 = ssub.s32 %s29, 2
        // Predicated region
        $region109: #{tpu_custom_call.1} parent=107 // pred_check
          %p2049 = pneg %p383
        $region110: #{tpu_custom_call.1} parent=107 // pred_check_branch
          %2051 = sbr.rel (%p2049) target = $region112
        $region111: #{tpu_custom_call.1} parent=107 // pred_region
          %s2052 = sand.u32 %s368, 1
          %s2053 = scalar_lea.sflag [#allocation5], %s2052
          %s2054 = sand.u32 %s368, 1
          %s2055 = smul.addr %s2054, 16
          %s2056 = scalar_lea.vmem [#allocation12], %s2055
          %2058 = dma.done %s2053, 256
        $region112: #{tpu_custom_call.1} parent=107 // pred_fallthru
          _
      $region108: #{tpu_custom_call.1} parent=5 // pred_fallthru
        _
    $region6: #{tpu_custom_call.1} parent=1 // loop_footer
      %s33 = sadd.s32 1, %s29
    $region7: #{tpu_custom_call.1} parent=1 // loop_footer_branch
      %28 = sbr.rel target = $region3
    $region8: #{tpu_custom_call.1} parent=1 // loop_exit
      _
    %2059 = vsyncpa [#allocation4], 1
    %s2060 = scalar_lea.sflag [#allocation4], 1
    %2061 = vsyncpa %s2060, 1
    %2062 = vsyncpa [#allocation7], 1
    %2063 = vsyncpa [#allocation10], 1
    %2064 = vsyncpa [#allocation5], 1
    %s2065 = scalar_lea.sflag [#allocation5], 1
    %2066 = vsyncpa %s2065, 1

</llo_original>
